<compile_context>
chip_gen: v7x
topology: tpu7x:2x2x1
jax: 0.10.0
libtpu: 0.0.40
codegen_flags: <defaults>
</compile_context>

<pallas_src>
from functools import partial

import numpy as np
import jax
import jax.numpy as jnp
from jax.experimental import pallas as pl
from jax.experimental.pallas import tpu as pltpu


# ----------------------------------------------------------------------------
# Small helpers
# ----------------------------------------------------------------------------
def _round_up(n, m):
    return (n + m - 1) // m * m


def _cdiv(a, b):
    return -(-a // b)


# ----------------------------------------------------------------------------
# Pallas tiled matmul with fused bias + epilogue
# ----------------------------------------------------------------------------
def _make_mm_kernel(activation):
    """activation: "none" | "lrelu" | ("sigmoid_rows", lo, hi)."""

    def kernel(a_ref, b_ref, bias_ref, o_ref):
        k = pl.program_id(2)

        @pl.when(k == 0)
        def _():
            # Initialize the resident output block with the bias.
            o_ref[0] = jnp.broadcast_to(bias_ref[0], o_ref.shape[1:])

        # bf16 operands on the MXU, f32 accumulation directly in o_ref
        # (its block index is constant across k, so it stays VMEM-resident).
        o_ref[0] += jnp.dot(a_ref[0], b_ref[0],
                            preferred_element_type=jnp.float32)

        if activation != "none":
            @pl.when(k == pl.num_programs(2) - 1)
            def _():
                v = o_ref[0]
                if activation == "lrelu":
                    v = jnp.where(v >= 0, v, jnp.float32(0.1) * v)
                else:  # ("sigmoid_rows", lo, hi): sigmoid only on mask rows
                    _, lo, hi = activation
                    row = jax.lax.broadcasted_iota(jnp.int32, v.shape, 0)
                    sig = 1.0 / (1.0 + jnp.exp(-v))
                    v = jnp.where((row >= lo) & (row < hi), sig, v)
                o_ref[0] = v

    return kernel


def batched_matmul_pallas(a, b, bias=None, activation="none"):
    """(G, M, K) @ (G, K, N) (+ bias (G, M)) -> (G, M, N) f32.

    Operands are cast to bf16 (MXU-native); accumulation is f32.  Both the
    pixel axis N and the reduction axis K are tiled; (G, N) are parallel grid
    axes, K is the innermost "arbitrary" (accumulation) axis.
    """
    G, M, K = a.shape
    _, _, N = b.shape

    Mp = _round_up(M, 8)
    tk = min(1024, _round_up(K, 128))
    Kp = _round_up(K, tk)
    tn = min(1024, _round_up(N, 128))
    Np = _round_up(N, tn)

    a = jnp.pad(a, ((0, 0), (0, Mp - M), (0, Kp - K))).astype(jnp.bfloat16)
    b = jnp.pad(b, ((0, 0), (0, Kp - K), (0, Np - N))).astype(jnp.bfloat16)
    if bias is None:
        bias_p = jnp.zeros((G, Mp, 1), jnp.float32)
    else:
        bias_p = jnp.pad(bias.astype(jnp.float32).reshape(G, M, 1),
                         ((0, 0), (0, Mp - M), (0, 0)))

    out = pl.pallas_call(
        _make_mm_kernel(activation),
        out_shape=jax.ShapeDtypeStruct((G, Mp, Np), jnp.float32),
        grid_spec=pltpu.PrefetchScalarGridSpec(
            num_scalar_prefetch=0,
            grid=(G, Np // tn, Kp // tk),
            in_specs=[
                pl.BlockSpec((1, Mp, tk), lambda g, n, k: (g, 0, k)),
                pl.BlockSpec((1, tk, tn), lambda g, n, k: (g, k, n)),
                pl.BlockSpec((1, Mp, 1), lambda g, n, k: (g, 0, 0)),
            ],
            out_specs=pl.BlockSpec((1, Mp, tn), lambda g, n, k: (g, 0, n)),
        ),
        compiler_params=pltpu.CompilerParams(
            dimension_semantics=("parallel", "parallel", "arbitrary"),
            vmem_limit_bytes=48 * 1024 * 1024),
    )(a, b, bias_p)

    if Mp != M or Np != N:
        out = out[:, :M, :N]
    return out


# ----------------------------------------------------------------------------
# Tiled elementwise Pallas kernels (lane-dense blocks, real grid)
# ----------------------------------------------------------------------------
_EW_LANE = 1024   # lane-dense last dim (multiple of 128)
_EW_ROWS = 256    # sublane rows per block  -> 1 MiB f32 blocks


def _elementwise_call(kernel, *arrays):
    shape = arrays[0].shape
    size = arrays[0].size
    cols = _EW_LANE
    rows = _cdiv(size, cols)
    if rows <= _EW_ROWS:
        br, grid_r = rows, 1
    else:
        br = _EW_ROWS
        grid_r = _cdiv(rows, br)
    padded = grid_r * br * cols

    flat = [jnp.pad(x.reshape(-1), (0, padded - size)).reshape(grid_r * br, cols)
            for x in arrays]

    out = pl.pallas_call(
        kernel,
        out_shape=jax.ShapeDtypeStruct((grid_r * br, cols), jnp.float32),
        grid=(grid_r,),
        in_specs=[pl.BlockSpec((br, cols), lambda i: (i, 0)) for _ in flat],
        out_specs=pl.BlockSpec((br, cols), lambda i: (i, 0)),
        compiler_params=pltpu.CompilerParams(
            dimension_semantics=("parallel",)),
    )(*flat)

    out = out.reshape(-1)
    if padded != size:
        out = out[:size]
    return out.reshape(shape)


def _make_sft_res_kernel(lrelu):
    def kernel(x_ref, d_ref, g_ref, b_ref, o_ref):
        x = x_ref[...]
        v = x + d_ref[...] + x * g_ref[...] + b_ref[...]
        if lrelu:
            v = jnp.where(v >= 0, v, jnp.float32(0.1) * v)
        o_ref[...] = v
    return kernel


_SFT_RES_KERNELS = {False: _make_sft_res_kernel(False),
                    True: _make_sft_res_kernel(True)}


@partial(jax.jit, static_argnames=("lrelu",))
def sft_residual(x, dcn, gamma, beta, *, lrelu=False):
    # miniLDB combine: x + DCN(x, inter) + (x * gamma + beta)  (+ fused LeakyReLU)
    return _elementwise_call(_SFT_RES_KERNELS[lrelu], x, dcn, gamma, beta)


# ----------------------------------------------------------------------------
# Convolution = im2col (JAX glue, bf16) + Pallas matmul (+ fused epilogue)
# ----------------------------------------------------------------------------
def _im2col(x, kh, kw, pad):
    # TODO(synk): the k=31 RepLK path still materializes the full 961x-inflated
    # im2col in HBM; a streamed shifted-window Pallas pipeline would avoid it.
    B, C, H, W = x.shape
    xp = jnp.pad(x, ((0, 0), (0, 0), (pad, pad), (pad, pad)))
    ri = jnp.arange(H)[:, None] + jnp.arange(kh)[None, :]       # (H, kh)
    ci = jnp.arange(W)[:, None] + jnp.arange(kw)[None, :]       # (W, kw)
    p = xp[:, :, ri, :]                                         # (B,C,H,kh,Wp)
    p = p[:, :, :, :, ci]                                       # (B,C,H,kh,W,kw)
    p = p.transpose(0, 1, 3, 5, 2, 4)                           # (B,C,kh,kw,H,W)
    return p.reshape(B, C * kh * kw, H * W)


@partial(jax.jit, static_argnames=("padding", "groups", "activation"))
def conv2d_nchw(x, w, b, *, padding, groups=1, activation="none"):
    """stride-1 Conv2d, NCHW input, OIHW weight, optional bias + fused epilogue."""
    B, C, H, W = x.shape
    Cout, Cin_g, kh, kw = w.shape
    KK = kh * kw
    P = H * W
    x = x.astype(jnp.bfloat16)                                  # bf16 cols
    cols = _im2col(x, kh, kw, padding)                          # (B, C*KK, P)
    cols = cols.reshape(B, groups, Cin_g * KK, P)
    cols = cols.transpose(1, 2, 0, 3).reshape(groups, Cin_g * KK, B * P)
    wg = w.reshape(groups, Cout // groups, Cin_g * KK)
    bg = None if b is None else b.reshape(groups, Cout // groups)
    out = batched_matmul_pallas(wg, cols, bg, activation=activation)
    return out.reshape(Cout, B, H, W).transpose(1, 0, 2, 3)


# ----------------------------------------------------------------------------
# Modulated deformable conv (DCNv2): sampling in JAX, contraction in Pallas
# ----------------------------------------------------------------------------
def modulated_deform_conv(x, offset, mask, weight):
    # TODO(synk): the bilinear sampling gather is data-dependent; it stays in
    # plain JAX (no clean Pallas TPU equivalent without manual DMA gather).
    B, C, H, W = x.shape
    Cout, _, kh, kw = weight.shape
    pad = (kh - 1) // 2
    K = kh * kw
    dy = offset[:, :K]                                          # (B,K,H,W)
    dx = offset[:, K:]
    ky = jnp.repeat(jnp.arange(kh), kw).astype(x.dtype)
    kx = jnp.tile(jnp.arange(kw), kh).astype(x.dtype)
    py = (jnp.arange(H, dtype=x.dtype)[None, None, :, None]
          + (ky - pad)[None, :, None, None] + dy)
    px = (jnp.arange(W, dtype=x.dtype)[None, None, None, :]
          + (kx - pad)[None, :, None, None] + dx)
    y0 = jnp.floor(py)
    x0 = jnp.floor(px)
    xflat = x.reshape(B, C, H * W)
    acc = jnp.zeros((B, C, K, H * W), x.dtype)
    for oy, ox in ((0, 0), (0, 1), (1, 0), (1, 1)):
        yy = y0 + oy
        xx = x0 + ox
        wgt = (1.0 - jnp.abs(py - yy)) * (1.0 - jnp.abs(px - xx))
        valid = (yy >= 0) & (yy <= H - 1) & (xx >= 0) & (xx <= W - 1)
        wgt = jnp.where(valid, wgt, 0.0)
        idx = (jnp.clip(yy, 0, H - 1).astype(jnp.int32) * W
               + jnp.clip(xx, 0, W - 1).astype(jnp.int32))      # (B,K,H,W)
        g = jax.vmap(lambda xb, ib: xb[:, ib])(xflat, idx.reshape(B, K * H * W))
        acc = acc + g.reshape(B, C, K, H * W) * wgt.reshape(B, 1, K, H * W)
    acc = acc * mask.reshape(B, 1, K, H * W)
    cols = acc.transpose(1, 2, 0, 3).reshape(1, C * K, B * H * W)
    wmat = weight.reshape(1, Cout, C * K)
    out = batched_matmul_pallas(wmat, cols, None)               # (1, Cout, B*HW)
    return out.reshape(Cout, B, H, W).transpose(1, 0, 2, 3)


# ----------------------------------------------------------------------------
# Deterministic parameter init (synthetic; no checkpoints)
# ----------------------------------------------------------------------------
_RNG = np.random.default_rng(0)


def _w(cout, cin, k, scale=0.1):
    fan_in = cin * k * k
    w = _RNG.standard_normal((cout, cin, k, k), dtype=np.float32)
    return jnp.asarray(w * (scale / np.sqrt(fan_in)))


def _bias(c, scale=0.01):
    return jnp.asarray(_RNG.standard_normal((c,), dtype=np.float32) * scale)


def init_replk(cin, cout, groups):
    # RepLKNet ReparamLargeKernelConv (k=31 + small k=5, conv+BN each);
    # BN and the small kernel are folded into a single 31x31 conv at init:
    # pad the 5x5 kernel to 31x31 (centered) and sum — identical output for
    # "same"-padded stride-1 convs.
    lk_w, lk_b = _w(cout, cin // groups, 31), _bias(cout)
    sk_w, sk_b = _w(cout, cin // groups, 5), _bias(cout)
    w = lk_w + jnp.pad(sk_w, ((0, 0), (0, 0), (13, 13), (13, 13)))
    return {"w": w, "b": lk_b + sk_b}


def init_dcn(cin, cout, k):
    return {"w": _w(cout, cin, k),
            "off_w": _w(3 * k * k, cin * 2, k, scale=0.01),
            "off_b": jnp.zeros((3 * k * k,), jnp.float32)}


def init_sft(cin, cout):
    g1, b1 = _w(cout, cin, 1), _w(cout, cin, 1)
    g2, b2 = _w(cout, cout, 1), _w(cout, cout, 1)
    # Fuse gamma/beta branches: one M=2*cout 1x1 conv, then a groups=2 1x1 conv.
    return {"w1": jnp.concatenate([g1, b1], axis=0),
            "w2": jnp.concatenate([g2, b2], axis=0)}


def init_minildb(cin, cout, k):
    return {"dcn": init_dcn(cin, cout, k), "sft": init_sft(cin, cout)}


def init_ldb(n, k):
    return {"m1": init_minildb(n, n, k),
            "replk": init_replk(n, n, 8),
            "m2": init_minildb(n, n, k),
            "conv_w": _w(n, n, k), "conv_b": _bias(n)}


def init_ldg(n, k):
    return {"ldbs": [init_ldb(n, k) for _ in range(5)],
            "replk": init_replk(n, n, 8)}


def init_ldrn():
    return {"head": init_replk(3, 64, 1),
            "ldgs": [init_ldg(64, 3) for _ in range(5)],
            "conv_w": _w(64, 64, 3), "conv_b": _bias(64),
            "tail": init_replk(64, 3, 1)}


# ----------------------------------------------------------------------------
# Functional forward passes mirroring the PyTorch modules
# ----------------------------------------------------------------------------
def dcn_forward(p, x, inter):
    k = p["w"].shape[-1]
    pad = (k - 1) // 2
    K = k * k
    cat = jnp.concatenate([x, inter], axis=1)
    # sigmoid over the mask rows [2K, 3K) fused into the matmul epilogue.
    out = conv2d_nchw(cat, p["off_w"], p["off_b"], padding=pad, groups=1,
                      activation=("sigmoid_rows", 2 * K, 3 * K))
    offset = out[:, :2 * K]                                     # [dy(K), dx(K)]
    mask = out[:, 2 * K:]                                       # already sigmoided
    return modulated_deform_conv(x, offset, mask, p["w"])


def sft_gamma_beta(p, inter):
    cout = p["w1"].shape[0] // 2
    # One M=128 matmul with fused LeakyReLU for both branches' first 1x1 conv.
    h = conv2d_nchw(inter, p["w1"], None, padding=0, groups=1, activation="lrelu")
    # Second 1x1 convs of both branches as a single groups=2 conv (G=2 matmul).
    gb = conv2d_nchw(h, p["w2"], None, padding=0, groups=2)
    return gb[:, :cout], gb[:, cout:]


@partial(jax.jit, static_argnames=("lrelu",))
def minildb_forward(p, x, inter, *, lrelu=False):
    dcn_out = dcn_forward(p["dcn"], x, inter)
    gamma, beta = sft_gamma_beta(p["sft"], inter)
    return sft_residual(x, dcn_out, gamma, beta, lrelu=lrelu)


@partial(jax.jit, static_argnames=("groups", "activation"))
def replk_forward(p, x, *, groups, activation="none"):
    # Reparameterized: a single 31x31 conv (+ optional fused LeakyReLU).
    return conv2d_nchw(x, p["w"], p["b"], padding=15, groups=groups,
                       activation=activation)


def ldb_forward(p, x, inter):
    out = minildb_forward(p["m1"], x, inter, lrelu=True)        # fused LeakyReLU
    out = replk_forward(p["replk"], out, groups=8, activation="lrelu")
    out = minildb_forward(p["m2"], out, inter, lrelu=True)      # fused LeakyReLU
    out = conv2d_nchw(out, p["conv_w"], p["conv_b"], padding=1, groups=1) + x
    return out


def ldg_forward(p, x, inter):
    q = x
    for ldb in p["ldbs"]:
        q = ldb_forward(ldb, q, inter)
    q = replk_forward(p["replk"], q, groups=8)
    return q + x


def ldrn_forward(p, x, query):
    x0 = replk_forward(p["head"], x, groups=1)
    inter = x0
    for ldg in p["ldgs"]:
        inter = ldg_forward(ldg, inter, query)
    inter = conv2d_nchw(inter, p["conv_w"], p["conv_b"], padding=1, groups=1)
    inter = inter + x0
    return replk_forward(p["tail"], inter, groups=1)


# ----------------------------------------------------------------------------
if __name__ == "__main__":
    params = init_ldrn()
    key = jax.random.PRNGKey(0)
    kx, kq = jax.random.split(key)
    x = jax.random.normal(kx, (2, 3, 16, 16), dtype=jnp.float32)
    query = jax.random.normal(kq, (2, 64, 16, 16), dtype=jnp.float32)

    out = ldrn_forward(params, x, query)
    out = jax.block_until_ready(out)

    assert out.shape == (2, 3, 16, 16), out.shape
    assert bool(jnp.all(jnp.isfinite(out)))
    print("KERNEL_OK")
</pallas_src>

<mosaic_0001>
module attributes {stable_mosaic.version = 11 : i64} {
  func.func @kernel(%arg0: i32, %arg1: i32, %arg2: i32, %arg3: memref<1x64x1024xbf16, #tpu.memory_space<vmem>>, %arg4: memref<1x1024x512xbf16, #tpu.memory_space<vmem>>, %arg5: memref<1x64x1xf32, #tpu.memory_space<vmem>>, %arg6: memref<1x64x512xf32, #tpu.memory_space<vmem>>) attributes {dimension_semantics = [#tpu.dimension_semantics<parallel>, #tpu.dimension_semantics<parallel>, #tpu.dimension_semantics<arbitrary>], iteration_bounds = array<i64: 1, 1, 3>, scalar_prefetch = 0 : i64, scratch_operands = 0 : i64, tpu.core_type = #tpu.core_type<tc>, window_params = [{transform_indices = @transform_0, window_bounds = array<i64: 1, 64, 1024>}, {transform_indices = @transform_1, window_bounds = array<i64: 1, 1024, 512>}, {transform_indices = @transform_2, window_bounds = array<i64: 1, 64, 1>}, {transform_indices = @transform_3, window_bounds = array<i64: 1, 64, 512>}]} {
    %c0_i32 = arith.constant 0 : i32
    %0 = arith.cmpi eq, %arg2, %c0_i32 : i32
    %1 = arith.extui %0 : i1 to i32
    %c0_i32_0 = arith.constant 0 : i32
    %2 = arith.cmpi ne, %1, %c0_i32_0 : i32
    scf.if %2 {
      %c0_12 = arith.constant 0 : index
      %c0_13 = arith.constant 0 : index
      %c0_14 = arith.constant 0 : index
      %14 = vector.load %arg5[%c0_12, %c0_13, %c0_14] : memref<1x64x1xf32, #tpu.memory_space<vmem>>, vector<1x64x1xf32>
      %15 = vector.shape_cast %14 : vector<1x64x1xf32> to vector<64x1xf32>
      %16 = vector.shape_cast %15 : vector<64x1xf32> to vector<64x1xf32>
      %17 = vector.broadcast %16 : vector<64x1xf32> to vector<64x512xf32>
      %c0_15 = arith.constant 0 : index
      %c0_16 = arith.constant 0 : index
      %c0_17 = arith.constant 0 : index
      %18 = vector.load %arg6[%c0_15, %c0_16, %c0_17] : memref<1x64x512xf32, #tpu.memory_space<vmem>>, vector<1x64x512xf32>
      %19 = vector.shape_cast %18 : vector<1x64x512xf32> to vector<64x512xf32>
      %20 = vector.shape_cast %17 : vector<64x512xf32> to vector<1x64x512xf32>
      tpu.vector_store %arg6[%c0_15, %c0_16, %c0_17], %20 {strides = array<i32>} : memref<1x64x512xf32, #tpu.memory_space<vmem>>, vector<1x64x512xf32>,
    } else {
    }
    %c0 = arith.constant 0 : index
    %c0_1 = arith.constant 0 : index
    %c0_2 = arith.constant 0 : index
    %3 = vector.load %arg6[%c0, %c0_1, %c0_2] : memref<1x64x512xf32, #tpu.memory_space<vmem>>, vector<1x64x512xf32>
    %4 = vector.shape_cast %3 : vector<1x64x512xf32> to vector<64x512xf32>
    %c0_3 = arith.constant 0 : index
    %c0_4 = arith.constant 0 : index
    %c0_5 = arith.constant 0 : index
    %5 = vector.load %arg3[%c0_3, %c0_4, %c0_5] : memref<1x64x1024xbf16, #tpu.memory_space<vmem>>, vector<1x64x1024xbf16>
    %6 = vector.shape_cast %5 : vector<1x64x1024xbf16> to vector<64x1024xbf16>
    %c0_6 = arith.constant 0 : index
    %c0_7 = arith.constant 0 : index
    %c0_8 = arith.constant 0 : index
    %7 = vector.load %arg4[%c0_6, %c0_7, %c0_8] : memref<1x1024x512xbf16, #tpu.memory_space<vmem>>, vector<1x1024x512xbf16>
    %8 = vector.shape_cast %7 : vector<1x1024x512xbf16> to vector<1024x512xbf16>
    %cst = arith.constant dense<0.000000e+00> : vector<64x512xf32>
    %9 = tpu.matmul %6, %8, %cst {dimension_numbers = #tpu.dot_dimension_numbers<[1], [0], [0], [1], [0, 0, 1, 1], [], []>} : vector<64x1024xbf16>, vector<1024x512xbf16>, vector<64x512xf32> -> vector<64x512xf32>
    %10 = arith.addf %4, %9 : vector<64x512xf32>
    %c0_9 = arith.constant 0 : index
    %c0_10 = arith.constant 0 : index
    %c0_11 = arith.constant 0 : index
    %11 = vector.load %arg6[%c0_9, %c0_10, %c0_11] : memref<1x64x512xf32, #tpu.memory_space<vmem>>, vector<1x64x512xf32>
    %12 = vector.shape_cast %11 : vector<1x64x512xf32> to vector<64x512xf32>
    %13 = vector.shape_cast %10 : vector<64x512xf32> to vector<1x64x512xf32>
    tpu.vector_store %arg6[%c0_9, %c0_10, %c0_11], %13 {strides = array<i32>} : memref<1x64x512xf32, #tpu.memory_space<vmem>>, vector<1x64x512xf32>,
    return
  }
  func.func @transform_0(%arg0: i32, %arg1: i32, %arg2: i32) -> (i32, i32, i32) {
    %c0_i32 = arith.constant 0 : i32
    %c0_i32_0 = arith.constant 0 : i32
    return %arg0, %c0_i32, %arg2 : i32, i32, i32
  }
  func.func @transform_1(%arg0: i32, %arg1: i32, %arg2: i32) -> (i32, i32, i32) {
    %c0_i32 = arith.constant 0 : i32
    return %arg0, %arg2, %arg1 : i32, i32, i32
  }
  func.func @transform_2(%arg0: i32, %arg1: i32, %arg2: i32) -> (i32, i32, i32) {
    %c0_i32 = arith.constant 0 : i32
    %c0_i32_0 = arith.constant 0 : i32
    %c0_i32_1 = arith.constant 0 : i32
    return %arg0, %c0_i32, %c0_i32_0 : i32, i32, i32
  }
  func.func @transform_3(%arg0: i32, %arg1: i32, %arg2: i32) -> (i32, i32, i32) {
    %c0_i32 = arith.constant 0 : i32
    %c0_i32_0 = arith.constant 0 : i32
    return %arg0, %c0_i32, %arg1 : i32, i32, i32
  }
}

</mosaic_0001>

<llo_original>
// kernel: conv2d_nchw.1
$region0: #{conv2d_nchw.1}
  #allocation0 [shape = 'u32[]', space=smem, size = 0x4, offset = 0x4, fixed_abs, tag = 'smem constant byte address 0x4 - core index']
  #allocation1 [shape = 'u32[144,128]{1,0:T(1,128)}', space=vmem, size = 0x12000, scoped, tag = 'internal scratch']
  %s0 = inlined_call_operand.vmem [shape: bf16[1,64,3072], index: 0, kind: input, shape index: {}]
  %s1 = inlined_call_operand.vmem [shape: bf16[1,3072,512], index: 1, kind: input, shape index: {}]
  %s2 = inlined_call_operand.vmem [shape: f32[1,64,1], index: 2, kind: input, shape index: {}]
  %s3 = inlined_call_operand.vmem [shape: f32[1,64,512], index: 3, kind: output, shape index: {}]
  %s4 = sld [smem:[#allocation0]]
  $region72: #{conv2d_nchw.1} parent=0
    _
  %s6 = ssub.s32 1, %s4
  %s7 = scalar_select 0, %s6, %s4
  $region1: #{conv2d_nchw.1} parent=0
    #allocation2 [shape = 'u8[262144]{0}', space=vmem, size = 0x40000, scoped, tag = 'input window, operand 0']
    loop: start=0, step=1, limit=5
    $region2: #{conv2d_nchw.1} parent=1 // loop_pre_header
      _
    $region3: #{conv2d_nchw.1} parent=1 // loop_header
      %s9 = sphi 0, %s13
      %p10 = scmp.ge.s32.totalorder %s9, 5
      %s16 = sphi 0, %s35
      %s17 = sphi 0, %s31
      %s18 = sphi 0, %s27
      %s19 = sphi 0, %s16
      %s20 = sphi 0, %s17
      %s21 = sphi 0, %s18
      %s22 = sphi 0, %s19
      %s23 = sphi 0, %s20
      %s24 = sphi 0, %s21
      %s40 = sphi 0, %s42
      %s43 = sphi 0, %s40
      %s44 = sphi 0, %s43
      %s60 = sphi 0, %s44
      %s70 = sphi 0, %s72
      %s73 = sphi 0, %s70
      %s74 = sphi 0, %s73
      %s90 = sphi 0, %s74
      %s96 = sphi 0, %s98
      %s99 = sphi 0, %s96
      %s100 = sphi 0, %s99
      %s116 = sphi 0, %s100
      %s124 = sphi 0, %s126
      %s127 = sphi 0, %s124
      %s128 = sphi 0, %s127
      %s144 = sphi 0, %s128
    $region4: #{conv2d_nchw.1} parent=1 // loop_header_branch
      %12 = sbr.rel (%p10) target = $region8
    $region5: #{conv2d_nchw.1} parent=1 // loop_body
      %s14 = ssub.s32 %s9, 1
      %s15 = ssub.s32 %s9, 2
      %s25 = sadd.s32 1, %s18
      %p26 = scmp.ge.s32.totalorder %s25, 3
      %s27 = scalar_select %p26, 0, %s25
      %s28 = sadd.s32 1, %s17
      %s29 = scalar_select %p26, %s28, %s17
      %p30 = scmp.ge.s32.totalorder %s29, 1
      %s31 = scalar_select %p30, 0, %s29
      %s32 = sadd.s32 1, %s16
      %s33 = scalar_select %p30, %s32, %s16
      %p34 = scmp.ge.s32.totalorder %s33, 1
      %s35 = scalar_select %p34, 0, %s33
      %s36 = ssub.s32 %s16, %s35
      %s37 = ssub.s32 %s18, %s27
      %s38 = sor.u32 %s36, %s37
      %p39 = scmp.eq.s32.totalorder %s38, 0
      %s41 = sadd.s32 %s40, 1
      %s42 = scalar_select %p39, %s40, %s41
      %p45 = pneg %p39
      %p46 = scmp.eq.s32.totalorder %s9, 2
      %p47 = por %p45, %p46
      %p48 = scmp.ne.s32.totalorder %s40, %s43
      %p49 = scmp.eq.s32.totalorder %s9, 0
      %p50 = por %p48, %p49
      %p51 = scmp.ne.s32.totalorder %s40, %s43
      %p52 = scmp.eq.s32.totalorder %s14, 2
      %p53 = por %p51, %p52
      %p54 = scmp.ne.s32.totalorder %s43, %s44
      %p55 = scmp.eq.s32.totalorder %s14, 0
      %p56 = por %p54, %p55
      %p57 = scmp.ne.s32.totalorder %s43, %s44
      %p58 = scmp.eq.s32.totalorder %s15, 2
      %p59 = por %p57, %p58
      %p61 = scmp.ne.s32.totalorder %s44, %s60
      %p62 = scmp.eq.s32.totalorder %s15, 0
      %p63 = por %p61, %p62
      %s64 = ssub.s32 %s16, %s35
      %s65 = ssub.s32 %s18, %s27
      %s66 = sor.u32 %s64, %s65
      %s67 = ssub.s32 %s17, %s31
      %s68 = sor.u32 %s66, %s67
      %p69 = scmp.eq.s32.totalorder %s68, 0
      %s71 = sadd.s32 %s70, 1
      %s72 = scalar_select %p69, %s70, %s71
      %p75 = pneg %p69
      %p76 = scmp.eq.s32.totalorder %s9, 2
      %p77 = por %p75, %p76
      %p78 = scmp.ne.s32.totalorder %s70, %s73
      %p79 = scmp.eq.s32.totalorder %s9, 0
      %p80 = por %p78, %p79
      %p81 = scmp.ne.s32.totalorder %s70, %s73
      %p82 = scmp.eq.s32.totalorder %s14, 2
      %p83 = por %p81, %p82
      %p84 = scmp.ne.s32.totalorder %s73, %s74
      %p85 = scmp.eq.s32.totalorder %s14, 0
      %p86 = por %p84, %p85
      %p87 = scmp.ne.s32.totalorder %s73, %s74
      %p88 = scmp.eq.s32.totalorder %s15, 2
      %p89 = por %p87, %p88
      %p91 = scmp.ne.s32.totalorder %s74, %s90
      %p92 = scmp.eq.s32.totalorder %s15, 0
      %p93 = por %p91, %p92
      %s94 = ssub.s32 %s16, %s35
      %p95 = scmp.eq.s32.totalorder %s94, 0
      %s97 = sadd.s32 %s96, 1
      %s98 = scalar_select %p95, %s96, %s97
      %p101 = pneg %p95
      %p102 = scmp.eq.s32.totalorder %s9, 2
      %p103 = por %p101, %p102
      %p104 = scmp.ne.s32.totalorder %s96, %s99
      %p105 = scmp.eq.s32.totalorder %s9, 0
      %p106 = por %p104, %p105
      %p107 = scmp.ne.s32.totalorder %s96, %s99
      %p108 = scmp.eq.s32.totalorder %s14, 2
      %p109 = por %p107, %p108
      %p110 = scmp.ne.s32.totalorder %s99, %s100
      %p111 = scmp.eq.s32.totalorder %s14, 0
      %p112 = por %p110, %p111
      %p113 = scmp.ne.s32.totalorder %s99, %s100
      %p114 = scmp.eq.s32.totalorder %s15, 2
      %p115 = por %p113, %p114
      %p117 = scmp.ne.s32.totalorder %s100, %s116
      %p118 = scmp.eq.s32.totalorder %s15, 0
      %p119 = por %p117, %p118
      %s120 = ssub.s32 %s16, %s35
      %s121 = ssub.s32 %s17, %s31
      %s122 = sor.u32 %s120, %s121
      %p123 = scmp.eq.s32.totalorder %s122, 0
      %s125 = sadd.s32 %s124, 1
      %s126 = scalar_select %p123, %s124, %s125
      %p129 = pneg %p123
      %p130 = scmp.eq.s32.totalorder %s9, 2
      %p131 = por %p129, %p130
      %p132 = scmp.ne.s32.totalorder %s124, %s127
      %p133 = scmp.eq.s32.totalorder %s9, 0
      %p134 = por %p132, %p133
      %p135 = scmp.ne.s32.totalorder %s124, %s127
      %p136 = scmp.eq.s32.totalorder %s14, 2
      %p137 = por %p135, %p136
      %p138 = scmp.ne.s32.totalorder %s127, %s128
      %p139 = scmp.eq.s32.totalorder %s14, 0
      %p140 = por %p138, %p139
      %p141 = scmp.ne.s32.totalorder %s127, %s128
      %p142 = scmp.eq.s32.totalorder %s15, 2
      %p143 = por %p141, %p142
      %p145 = scmp.ne.s32.totalorder %s128, %s144
      %p146 = scmp.eq.s32.totalorder %s15, 0
      %p147 = por %p145, %p146
      %p148 = scmp.le.s32.totalorder 1, %s9
      %p149 = scmp.lt.s32.totalorder %s9, 4
      %p150 = pnand %p148, %p149
      %p151 = pneg %p150
      // Predicated region
      $region9: #{conv2d_nchw.1} parent=5 // pred_check
        _
      $region10: #{conv2d_nchw.1} parent=5 // pred_check_branch
        %153 = sbr.rel (%p150) target = $region12
      $region11: #{conv2d_nchw.1} parent=5 // pred_region
        %s154 = ssub.s32 %s9, 1
        // Predicated region
        $region13: #{conv2d_nchw.1} parent=11 // pred_check
          %p155 = pneg %p112
        $region14: #{conv2d_nchw.1} parent=11 // pred_check_branch
          %157 = sbr.rel (%p155) target = $region16
        $region15: #{conv2d_nchw.1} parent=11 // pred_region
          %p158 = scmp.lt.s32.totalorder %s19, 0
          %s159 = scalar_select %p158, %s19, 0
          %s160 = smul.addr %s159, 8
          %s161 = smul.addr %s160, 8
          %s162 = scalar_lea.vmem %s2, %s161
        $region16: #{conv2d_nchw.1} parent=11 // pred_fallthru
          _
      $region12: #{conv2d_nchw.1} parent=5 // pred_fallthru
        _
      %p163 = scmp.lt.s32.totalorder %s9, 3
      // Predicated region
      $region17: #{conv2d_nchw.1} parent=5 // pred_check
        %p164 = pneg %p163
      $region18: #{conv2d_nchw.1} parent=5 // pred_check_branch
        %166 = sbr.rel (%p164) target = $region20
      $region19: #{conv2d_nchw.1} parent=5 // pred_region
        // Predicated region
        $region21: #{conv2d_nchw.1} parent=19 // pred_check
          %p167 = pneg %p50
        $region22: #{conv2d_nchw.1} parent=19 // pred_check_branch
          %169 = sbr.rel (%p167) target = $region24
        $region23: #{conv2d_nchw.1} parent=19 // pred_region
          %s170 = sand.u32 %s40, 1
          %s171 = sand.u32 %s40, 1
          %s172 = smul.addr %s171, 256
          %s173 = scalar_lea.vmem [#allocation2], %s172
          %s174 = smul.u32 8, %s18
          %s175 = smul.addr %s16, 192
          %s176 = sadd.s32 %s174, %s175
          %s177 = smul.addr %s176, 4
          %s178 = scalar_lea.vmem %s0, %s177
          // Predicated region
          $region25: #{conv2d_nchw.1} parent=23 // pred_check
            _
          $region26: #{conv2d_nchw.1} parent=23 // pred_check_branch
            %180 = sbr.rel (0) target = $region28
          $region27: #{conv2d_nchw.1} parent=23 // pred_region
            // Predicated region
            $region29: #{conv2d_nchw.1} parent=27 // pred_check
              _
            $region30: #{conv2d_nchw.1} parent=27 // pred_check_branch
              %182 = sbr.rel (0) target = $region32
            $region31: #{conv2d_nchw.1} parent=27 // pred_region
              loop: start=0, step=1, limit=1
              $region33: #{conv2d_nchw.1} parent=31 // loop_pre_header
                _
              $region34: #{conv2d_nchw.1} parent=31 // loop_header
                %s184 = sphi 0, %s188
                %p185 = scmp.ge.s32.totalorder %s184, 1
                %s189 = sphi %s178, %s178
                %s190 = sphi %s173, %s173
              $region35: #{conv2d_nchw.1} parent=31 // loop_header_branch
                %187 = sbr.rel (%p185) target = $region39
              $region36: #{conv2d_nchw.1} parent=31 // loop_body
                %v191 = vld [vmem:[%s189] sm:$0xff]
                %192 = vst [vmem:[%s190] sm:$0xff] %v191
                %v193 = vld [vmem:[%s189 + $0x8] sm:$0xff]
                %194 = vst [vmem:[%s190 + $0x8] sm:$0xff] %v193
                %v195 = vld [vmem:[%s189 + $0x10] sm:$0xff]
                %196 = vst [vmem:[%s190 + $0x10] sm:$0xff] %v195
                %v197 = vld [vmem:[%s189 + $0x18] sm:$0xff]
                %198 = vst [vmem:[%s190 + $0x18] sm:$0xff] %v197
                %v199 = vld [vmem:[%s189 + $0x60] sm:$0xff]
                %200 = vst [vmem:[%s190 + $0x20] sm:$0xff] %v199
                %v201 = vld [vmem:[%s189 + $0x68] sm:$0xff]
                %202 = vst [vmem:[%s190 + $0x28] sm:$0xff] %v201
                %v203 = vld [vmem:[%s189 + $0x70] sm:$0xff]
                %204 = vst [vmem:[%s190 + $0x30] sm:$0xff] %v203
                %v205 = vld [vmem:[%s189 + $0x78] sm:$0xff]
                %206 = vst [vmem:[%s190 + $0x38] sm:$0xff] %v205
                %v207 = vld [vmem:[%s189 + $0xc0] sm:$0xff]
                %208 = vst [vmem:[%s190 + $0x40] sm:$0xff] %v207
                %v209 = vld [vmem:[%s189 + $0xc8] sm:$0xff]
                %210 = vst [vmem:[%s190 + $0x48] sm:$0xff] %v209
                %v211 = vld [vmem:[%s189 + $0xd0] sm:$0xff]
                %212 = vst [vmem:[%s190 + $0x50] sm:$0xff] %v211
                %v213 = vld [vmem:[%s189 + $0xd8] sm:$0xff]
                %214 = vst [vmem:[%s190 + $0x58] sm:$0xff] %v213
                %v215 = vld [vmem:[%s189 + $0x120] sm:$0xff]
                %216 = vst [vmem:[%s190 + $0x60] sm:$0xff] %v215
                %v217 = vld [vmem:[%s189 + $0x128] sm:$0xff]
                %218 = vst [vmem:[%s190 + $0x68] sm:$0xff] %v217
                %v219 = vld [vmem:[%s189 + $0x130] sm:$0xff]
                %220 = vst [vmem:[%s190 + $0x70] sm:$0xff] %v219
                %v221 = vld [vmem:[%s189 + $0x138] sm:$0xff]
                %222 = vst [vmem:[%s190 + $0x78] sm:$0xff] %v221
                %v223 = vld [vmem:[%s189 + $0x180] sm:$0xff]
                %224 = vst [vmem:[%s190 + $0x80] sm:$0xff] %v223
                %v225 = vld [vmem:[%s189 + $0x188] sm:$0xff]
                %226 = vst [vmem:[%s190 + $0x88] sm:$0xff] %v225
                %v227 = vld [vmem:[%s189 + $0x190] sm:$0xff]
                %228 = vst [vmem:[%s190 + $0x90] sm:$0xff] %v227
                %v229 = vld [vmem:[%s189 + $0x198] sm:$0xff]
                %230 = vst [vmem:[%s190 + $0x98] sm:$0xff] %v229
                %v231 = vld [vmem:[%s189 + $0x1e0] sm:$0xff]
                %232 = vst [vmem:[%s190 + $0xa0] sm:$0xff] %v231
                %v233 = vld [vmem:[%s189 + $0x1e8] sm:$0xff]
                %234 = vst [vmem:[%s190 + $0xa8] sm:$0xff] %v233
                %v235 = vld [vmem:[%s189 + $0x1f0] sm:$0xff]
                %236 = vst [vmem:[%s190 + $0xb0] sm:$0xff] %v235
                %v237 = vld [vmem:[%s189 + $0x1f8] sm:$0xff]
                %238 = vst [vmem:[%s190 + $0xb8] sm:$0xff] %v237
                %v239 = vld [vmem:[%s189 + $0x240] sm:$0xff]
                %240 = vst [vmem:[%s190 + $0xc0] sm:$0xff] %v239
                %v241 = vld [vmem:[%s189 + $0x248] sm:$0xff]
                %242 = vst [vmem:[%s190 + $0xc8] sm:$0xff] %v241
                %v243 = vld [vmem:[%s189 + $0x250] sm:$0xff]
                %244 = vst [vmem:[%s190 + $0xd0] sm:$0xff] %v243
                %v245 = vld [vmem:[%s189 + $0x258] sm:$0xff]
                %246 = vst [vmem:[%s190 + $0xd8] sm:$0xff] %v245
                %v247 = vld [vmem:[%s189 + $0x2a0] sm:$0xff]
                %248 = vst [vmem:[%s190 + $0xe0] sm:$0xff] %v247
                %v249 = vld [vmem:[%s189 + $0x2a8] sm:$0xff]
                %250 = vst [vmem:[%s190 + $0xe8] sm:$0xff] %v249
                %v251 = vld [vmem:[%s189 + $0x2b0] sm:$0xff]
                %252 = vst [vmem:[%s190 + $0xf0] sm:$0xff] %v251
                %v253 = vld [vmem:[%s189 + $0x2b8] sm:$0xff]
                %254 = vst [vmem:[%s190 + $0xf8] sm:$0xff] %v253
              $region37: #{conv2d_nchw.1} parent=31 // loop_footer
                %s188 = sadd.s32 1, %s184
              $region38: #{conv2d_nchw.1} parent=31 // loop_footer_branch
                %183 = sbr.rel target = $region34
              $region39: #{conv2d_nchw.1} parent=31 // loop_exit
                _
            $region32: #{conv2d_nchw.1} parent=27 // pred_fallthru
              _
            // Predicated region
            $region40: #{conv2d_nchw.1} parent=27 // pred_check
              _
            $region41: #{conv2d_nchw.1} parent=27 // pred_check_branch
              %256 = sbr.rel target = $region43
            $region42: #{conv2d_nchw.1} parent=27 // pred_region
              _
            $region43: #{conv2d_nchw.1} parent=27 // pred_fallthru
              _
          $region28: #{conv2d_nchw.1} parent=23 // pred_fallthru
            _
          %257 = vnop
        $region24: #{conv2d_nchw.1} parent=19 // pred_fallthru
          _
        // Predicated region
        $region44: #{conv2d_nchw.1} parent=19 // pred_check
          %p258 = pneg %p80
        $region45: #{conv2d_nchw.1} parent=19 // pred_check_branch
          %260 = sbr.rel (%p258) target = $region47
        $region46: #{conv2d_nchw.1} parent=19 // pred_region
          %s261 = smul.u32 128, %s18
          %s262 = smul.u32 4, %s17
          %p263 = scmp.lt.s32.totalorder %s16, 0
          %s264 = scalar_select %p263, %s16, 0
          %p265 = scmp.lt.s32.totalorder %s261, 383
          %s266 = scalar_select %p265, %s261, 383
          %p267 = scmp.lt.s32.totalorder %s262, 3
          %s268 = scalar_select %p267, %s262, 3
          %s269 = smul.addr %s266, 4
          %s270 = sadd.s32 %s268, %s269
          %s271 = smul.addr %s264, 1536
          %s272 = sadd.s32 %s270, %s271
          %s273 = smul.addr %s272, 4
          %s274 = scalar_lea.vmem %s1, %s273
          %s275 = smul.u32 128, %s18
          %s276 = smul.u32 4, %s17
        $region47: #{conv2d_nchw.1} parent=19 // pred_fallthru
          _
      $region20: #{conv2d_nchw.1} parent=5 // pred_fallthru
        _
      %p277 = scmp.le.s32.totalorder 1, %s9
      %p278 = scmp.lt.s32.totalorder %s9, 4
      %p279 = pnand %p277, %p278
      %p280 = pneg %p279
      // Predicated region
      $region48: #{conv2d_nchw.1} parent=5 // pred_check
        _
      $region49: #{conv2d_nchw.1} parent=5 // pred_check_branch
        %282 = sbr.rel (%p279) target = $region51
      $region50: #{conv2d_nchw.1} parent=5 // pred_region
        %s283 = ssub.s32 %s9, 1
        %s284 = sand.u32 %s43, 1
        %s285 = sand.u32 %s43, 1
        %s286 = smul.addr %s285, 256
        %s287 = scalar_lea.vmem [#allocation2], %s286
        // Predicated region
        $region52: #{conv2d_nchw.1} parent=50 // pred_check
          %p288 = pneg %p56
        $region53: #{conv2d_nchw.1} parent=50 // pred_check_branch
          %290 = sbr.rel (%p288) target = $region55
        $region54: #{conv2d_nchw.1} parent=50 // pred_region
          _
        $region55: #{conv2d_nchw.1} parent=50 // pred_fallthru
          _
        %s291 = sand.u32 %s43, 1
        %s292 = sand.u32 %s43, 1
        %s293 = smul.addr %s292, 256
        %s294 = scalar_lea.vmem [#allocation2], %s293
        %p295 = pneg %p56
        %p296 = pneg %p53
        %s297 = smul.u32 128, %s21
        %s298 = smul.u32 4, %s20
        %p299 = scmp.lt.s32.totalorder %s19, 0
        %s300 = scalar_select %p299, %s19, 0
        %p301 = scmp.lt.s32.totalorder %s297, 383
        %s302 = scalar_select %p301, %s297, 383
        %p303 = scmp.lt.s32.totalorder %s298, 3
        %s304 = scalar_select %p303, %s298, 3
        %s305 = smul.addr %s302, 4
        %s306 = sadd.s32 %s304, %s305
        %s307 = smul.addr %s300, 1536
        %s308 = sadd.s32 %s306, %s307
        %s309 = smul.addr %s308, 4
        %s310 = scalar_lea.vmem %s1, %s309
        %p311 = pneg %p86
        %p312 = pneg %p83
        %p313 = scmp.lt.s32.totalorder %s19, 0
        %s314 = scalar_select %p313, %s19, 0
        %s315 = smul.addr %s314, 8
        %s316 = smul.addr %s315, 8
        %s317 = scalar_lea.vmem %s2, %s316
        %p318 = pneg %p112
        %p319 = pneg %p109
        %p320 = pneg %p140
        %p321 = pneg %p137
        %s322 = smul.u32 4, %s20
        %p323 = scmp.lt.s32.totalorder %s19, 0
        %s324 = scalar_select %p323, %s19, 0
        %p325 = scmp.lt.s32.totalorder %s322, 3
        %s326 = scalar_select %p325, %s322, 3
        %s327 = smul.addr %s324, 32
        %s328 = sadd.s32 %s326, %s327
        %s329 = smul.addr %s328, 8
        %s330 = scalar_lea.vmem %s3, %s329
        %s331 = smul.u32 8, %s21
        %s332 = smul.u32 128, %s21
        %s333 = smul.u32 4, %s20
        %p334 = scmp.lt.s32.totalorder %s19, 0
        %s335 = scalar_select %p334, %s19, 0
        %p336 = scmp.lt.s32.totalorder %s332, 383
        %s337 = scalar_select %p336, %s332, 383
        %p338 = scmp.lt.s32.totalorder %s333, 3
        %s339 = scalar_select %p338, %s333, 3
        %s340 = smul.addr %s337, 4
        %s341 = sadd.s32 %s339, %s340
        %s342 = smul.addr %s335, 1536
        %s343 = sadd.s32 %s341, %s342
        %s344 = smul.addr %s343, 4
        %s345 = scalar_lea.vmem %s1, %s344
        %s346 = smul.u32 128, %s21
        %s347 = smul.u32 4, %s20
        %p348 = scmp.lt.s32.totalorder %s19, 0
        %s349 = scalar_select %p348, %s19, 0
        %s350 = smul.addr %s349, 8
        %s351 = smul.addr %s350, 8
        %s352 = scalar_lea.vmem %s2, %s351
        %s353 = smul.u32 4, %s20
        %p354 = scmp.lt.s32.totalorder %s19, 0
        %s355 = scalar_select %p354, %s19, 0
        %p356 = scmp.lt.s32.totalorder %s353, 3
        %s357 = scalar_select %p356, %s353, 3
        %s358 = smul.addr %s355, 32
        %s359 = sadd.s32 %s357, %s358
        %s360 = smul.addr %s359, 8
        %s361 = scalar_lea.vmem %s3, %s360
        %s362 = smul.u32 4, %s20
        %p363 = scmp.eq.s32.totalorder %s21, 0
        // Predicated region
        $region56: #{conv2d_nchw.1} parent=50 // pred_check
          %p364 = pneg %p363
        $region57: #{conv2d_nchw.1} parent=50 // pred_check_branch
          %366 = sbr.rel (%p364) target = $region59
        $region58: #{conv2d_nchw.1} parent=50 // pred_region
          %v367 = vld [vmem:[%s352] sm:$0xff]
          %v368 = vld [vmem:[%s352 + $0x8] sm:$0xff]
          %v369 = vld [vmem:[%s352 + $0x10] sm:$0xff]
          %v370 = vld [vmem:[%s352 + $0x18] sm:$0xff]
          %v371 = vld [vmem:[%s352 + $0x20] sm:$0xff]
          %v372 = vld [vmem:[%s352 + $0x28] sm:$0xff]
          %v373 = vld [vmem:[%s352 + $0x30] sm:$0xff]
          %v374 = vld [vmem:[%s352 + $0x38] sm:$0xff]
          %376 = vset.pattern.permute.xlu0 0
          %377 = vperm.xlu0 %376, %v367
          %v378 = vpop.permute.xlu0 %377
          %381 = vset.pattern.permute.xlu0 0
          %382 = vperm.xlu0 %381, %v368
          %v383 = vpop.permute.xlu0 %382
          %386 = vset.pattern.permute.xlu0 0
          %387 = vperm.xlu0 %386, %v369
          %v388 = vpop.permute.xlu0 %387
          %391 = vset.pattern.permute.xlu0 0
          %392 = vperm.xlu0 %391, %v370
          %v393 = vpop.permute.xlu0 %392
          %396 = vset.pattern.permute.xlu0 0
          %397 = vperm.xlu0 %396, %v371
          %v398 = vpop.permute.xlu0 %397
          %401 = vset.pattern.permute.xlu0 0
          %402 = vperm.xlu0 %401, %v372
          %v403 = vpop.permute.xlu0 %402
          %406 = vset.pattern.permute.xlu0 0
          %407 = vperm.xlu0 %406, %v373
          %v408 = vpop.permute.xlu0 %407
          %411 = vset.pattern.permute.xlu0 0
          %412 = vperm.xlu0 %411, %v374
          %v413 = vpop.permute.xlu0 %412
          %415 = vst [vmem:[%s361] sm:$0xff] %v378
          %416 = vst [vmem:[%s361 + $0x8] sm:$0xff] %v378
          %417 = vst [vmem:[%s361 + $0x10] sm:$0xff] %v378
          %418 = vst [vmem:[%s361 + $0x18] sm:$0xff] %v378
          %419 = vst [vmem:[%s361 + $0x20] sm:$0xff] %v383
          %420 = vst [vmem:[%s361 + $0x28] sm:$0xff] %v383
          %421 = vst [vmem:[%s361 + $0x30] sm:$0xff] %v383
          %422 = vst [vmem:[%s361 + $0x38] sm:$0xff] %v383
          %423 = vst [vmem:[%s361 + $0x40] sm:$0xff] %v388
          %424 = vst [vmem:[%s361 + $0x48] sm:$0xff] %v388
          %425 = vst [vmem:[%s361 + $0x50] sm:$0xff] %v388
          %426 = vst [vmem:[%s361 + $0x58] sm:$0xff] %v388
          %427 = vst [vmem:[%s361 + $0x60] sm:$0xff] %v393
          %428 = vst [vmem:[%s361 + $0x68] sm:$0xff] %v393
          %429 = vst [vmem:[%s361 + $0x70] sm:$0xff] %v393
          %430 = vst [vmem:[%s361 + $0x78] sm:$0xff] %v393
          %431 = vst [vmem:[%s361 + $0x80] sm:$0xff] %v398
          %432 = vst [vmem:[%s361 + $0x88] sm:$0xff] %v398
          %433 = vst [vmem:[%s361 + $0x90] sm:$0xff] %v398
          %434 = vst [vmem:[%s361 + $0x98] sm:$0xff] %v398
          %435 = vst [vmem:[%s361 + $0xa0] sm:$0xff] %v403
          %436 = vst [vmem:[%s361 + $0xa8] sm:$0xff] %v403
          %437 = vst [vmem:[%s361 + $0xb0] sm:$0xff] %v403
          %438 = vst [vmem:[%s361 + $0xb8] sm:$0xff] %v403
          %439 = vst [vmem:[%s361 + $0xc0] sm:$0xff] %v408
          %440 = vst [vmem:[%s361 + $0xc8] sm:$0xff] %v408
          %441 = vst [vmem:[%s361 + $0xd0] sm:$0xff] %v408
          %442 = vst [vmem:[%s361 + $0xd8] sm:$0xff] %v408
          %443 = vst [vmem:[%s361 + $0xe0] sm:$0xff] %v413
          %444 = vst [vmem:[%s361 + $0xe8] sm:$0xff] %v413
          %445 = vst [vmem:[%s361 + $0xf0] sm:$0xff] %v413
          %446 = vst [vmem:[%s361 + $0xf8] sm:$0xff] %v413
        $region59: #{conv2d_nchw.1} parent=50 // pred_fallthru
          _
        %v447 = vld [vmem:[%s361] sm:$0xff]
        %v448 = vld [vmem:[%s361 + $0x8] sm:$0xff]
        %v449 = vld [vmem:[%s361 + $0x10] sm:$0xff]
        %v450 = vld [vmem:[%s361 + $0x18] sm:$0xff]
        %v451 = vld [vmem:[%s361 + $0x20] sm:$0xff]
        %v452 = vld [vmem:[%s361 + $0x28] sm:$0xff]
        %v453 = vld [vmem:[%s361 + $0x30] sm:$0xff]
        %v454 = vld [vmem:[%s361 + $0x38] sm:$0xff]
        %v455 = vld [vmem:[%s361 + $0x40] sm:$0xff]
        %v456 = vld [vmem:[%s361 + $0x48] sm:$0xff]
        %v457 = vld [vmem:[%s361 + $0x50] sm:$0xff]
        %v458 = vld [vmem:[%s361 + $0x58] sm:$0xff]
        %v459 = vld [vmem:[%s361 + $0x60] sm:$0xff]
        %v460 = vld [vmem:[%s361 + $0x68] sm:$0xff]
        %v461 = vld [vmem:[%s361 + $0x70] sm:$0xff]
        %v462 = vld [vmem:[%s361 + $0x78] sm:$0xff]
        %v463 = vld [vmem:[%s361 + $0x80] sm:$0xff]
        %v464 = vld [vmem:[%s361 + $0x88] sm:$0xff]
        %v465 = vld [vmem:[%s361 + $0x90] sm:$0xff]
        %v466 = vld [vmem:[%s361 + $0x98] sm:$0xff]
        %v467 = vld [vmem:[%s361 + $0xa0] sm:$0xff]
        %v468 = vld [vmem:[%s361 + $0xa8] sm:$0xff]
        %v469 = vld [vmem:[%s361 + $0xb0] sm:$0xff]
        %v470 = vld [vmem:[%s361 + $0xb8] sm:$0xff]
        %v471 = vld [vmem:[%s361 + $0xc0] sm:$0xff]
        %v472 = vld [vmem:[%s361 + $0xc8] sm:$0xff]
        %v473 = vld [vmem:[%s361 + $0xd0] sm:$0xff]
        %v474 = vld [vmem:[%s361 + $0xd8] sm:$0xff]
        %v475 = vld [vmem:[%s361 + $0xe0] sm:$0xff]
        %v476 = vld [vmem:[%s361 + $0xe8] sm:$0xff]
        %v477 = vld [vmem:[%s361 + $0xf0] sm:$0xff]
        %v478 = vld [vmem:[%s361 + $0xf8] sm:$0xff]
        %v479 = vld [vmem:[%s287] sm:$0xff]
        %v480 = vld [vmem:[%s287 + $0x8] sm:$0xff]
        %v481 = vld [vmem:[%s287 + $0x10] sm:$0xff]
        %v482 = vld [vmem:[%s287 + $0x18] sm:$0xff]
        %v483 = vld [vmem:[%s287 + $0x20] sm:$0xff]
        %v484 = vld [vmem:[%s287 + $0x28] sm:$0xff]
        %v485 = vld [vmem:[%s287 + $0x30] sm:$0xff]
        %v486 = vld [vmem:[%s287 + $0x38] sm:$0xff]
        %v487 = vld [vmem:[%s287 + $0x40] sm:$0xff]
        %v488 = vld [vmem:[%s287 + $0x48] sm:$0xff]
        %v489 = vld [vmem:[%s287 + $0x50] sm:$0xff]
        %v490 = vld [vmem:[%s287 + $0x58] sm:$0xff]
        %v491 = vld [vmem:[%s287 + $0x60] sm:$0xff]
        %v492 = vld [vmem:[%s287 + $0x68] sm:$0xff]
        %v493 = vld [vmem:[%s287 + $0x70] sm:$0xff]
        %v494 = vld [vmem:[%s287 + $0x78] sm:$0xff]
        %v495 = vld [vmem:[%s287 + $0x80] sm:$0xff]
        %v496 = vld [vmem:[%s287 + $0x88] sm:$0xff]
        %v497 = vld [vmem:[%s287 + $0x90] sm:$0xff]
        %v498 = vld [vmem:[%s287 + $0x98] sm:$0xff]
        %v499 = vld [vmem:[%s287 + $0xa0] sm:$0xff]
        %v500 = vld [vmem:[%s287 + $0xa8] sm:$0xff]
        %v501 = vld [vmem:[%s287 + $0xb0] sm:$0xff]
        %v502 = vld [vmem:[%s287 + $0xb8] sm:$0xff]
        %v503 = vld [vmem:[%s287 + $0xc0] sm:$0xff]
        %v504 = vld [vmem:[%s287 + $0xc8] sm:$0xff]
        %v505 = vld [vmem:[%s287 + $0xd0] sm:$0xff]
        %v506 = vld [vmem:[%s287 + $0xd8] sm:$0xff]
        %v507 = vld [vmem:[%s287 + $0xe0] sm:$0xff]
        %v508 = vld [vmem:[%s287 + $0xe8] sm:$0xff]
        %v509 = vld [vmem:[%s287 + $0xf0] sm:$0xff]
        %v510 = vld [vmem:[%s287 + $0xf8] sm:$0xff]
        %v511 = vld [vmem:[%s345] sm:$0xff]
        %v512 = vld [vmem:[%s345 + $0x8] sm:$0xff]
        %v513 = vld [vmem:[%s345 + $0x10] sm:$0xff]
        %v514 = vld [vmem:[%s345 + $0x18] sm:$0xff]
        %v515 = vld [vmem:[%s345 + $0x20] sm:$0xff]
        %v516 = vld [vmem:[%s345 + $0x28] sm:$0xff]
        %v517 = vld [vmem:[%s345 + $0x30] sm:$0xff]
        %v518 = vld [vmem:[%s345 + $0x38] sm:$0xff]
        %v519 = vld [vmem:[%s345 + $0x40] sm:$0xff]
        %v520 = vld [vmem:[%s345 + $0x48] sm:$0xff]
        %v521 = vld [vmem:[%s345 + $0x50] sm:$0xff]
        %v522 = vld [vmem:[%s345 + $0x58] sm:$0xff]
        %v523 = vld [vmem:[%s345 + $0x60] sm:$0xff]
        %v524 = vld [vmem:[%s345 + $0x68] sm:$0xff]
        %v525 = vld [vmem:[%s345 + $0x70] sm:$0xff]
        %v526 = vld [vmem:[%s345 + $0x78] sm:$0xff]
        %v527 = vld [vmem:[%s345 + $0x80] sm:$0xff]
        %v528 = vld [vmem:[%s345 + $0x88] sm:$0xff]
        %v529 = vld [vmem:[%s345 + $0x90] sm:$0xff]
        %v530 = vld [vmem:[%s345 + $0x98] sm:$0xff]
        %v531 = vld [vmem:[%s345 + $0xa0] sm:$0xff]
        %v532 = vld [vmem:[%s345 + $0xa8] sm:$0xff]
        %v533 = vld [vmem:[%s345 + $0xb0] sm:$0xff]
        %v534 = vld [vmem:[%s345 + $0xb8] sm:$0xff]
        %v535 = vld [vmem:[%s345 + $0xc0] sm:$0xff]
        %v536 = vld [vmem:[%s345 + $0xc8] sm:$0xff]
        %v537 = vld [vmem:[%s345 + $0xd0] sm:$0xff]
        %v538 = vld [vmem:[%s345 + $0xd8] sm:$0xff]
        %v539 = vld [vmem:[%s345 + $0xe0] sm:$0xff]
        %v540 = vld [vmem:[%s345 + $0xe8] sm:$0xff]
        %v541 = vld [vmem:[%s345 + $0xf0] sm:$0xff]
        %v542 = vld [vmem:[%s345 + $0xf8] sm:$0xff]
        %v543 = vld [vmem:[%s345 + $0x100] sm:$0xff]
        %v544 = vld [vmem:[%s345 + $0x108] sm:$0xff]
        %v545 = vld [vmem:[%s345 + $0x110] sm:$0xff]
        %v546 = vld [vmem:[%s345 + $0x118] sm:$0xff]
        %v547 = vld [vmem:[%s345 + $0x120] sm:$0xff]
        %v548 = vld [vmem:[%s345 + $0x128] sm:$0xff]
        %v549 = vld [vmem:[%s345 + $0x130] sm:$0xff]
        %v550 = vld [vmem:[%s345 + $0x138] sm:$0xff]
        %v551 = vld [vmem:[%s345 + $0x140] sm:$0xff]
        %v552 = vld [vmem:[%s345 + $0x148] sm:$0xff]
        %v553 = vld [vmem:[%s345 + $0x150] sm:$0xff]
        %v554 = vld [vmem:[%s345 + $0x158] sm:$0xff]
        %v555 = vld [vmem:[%s345 + $0x160] sm:$0xff]
        %v556 = vld [vmem:[%s345 + $0x168] sm:$0xff]
        %v557 = vld [vmem:[%s345 + $0x170] sm:$0xff]
        %v558 = vld [vmem:[%s345 + $0x178] sm:$0xff]
        %v559 = vld [vmem:[%s345 + $0x180] sm:$0xff]
        %v560 = vld [vmem:[%s345 + $0x188] sm:$0xff]
        %v561 = vld [vmem:[%s345 + $0x190] sm:$0xff]
        %v562 = vld [vmem:[%s345 + $0x198] sm:$0xff]
        %v563 = vld [vmem:[%s345 + $0x1a0] sm:$0xff]
        %v564 = vld [vmem:[%s345 + $0x1a8] sm:$0xff]
        %v565 = vld [vmem:[%s345 + $0x1b0] sm:$0xff]
        %v566 = vld [vmem:[%s345 + $0x1b8] sm:$0xff]
        %v567 = vld [vmem:[%s345 + $0x1c0] sm:$0xff]
        %v568 = vld [vmem:[%s345 + $0x1c8] sm:$0xff]
        %v569 = vld [vmem:[%s345 + $0x1d0] sm:$0xff]
        %v570 = vld [vmem:[%s345 + $0x1d8] sm:$0xff]
        %v571 = vld [vmem:[%s345 + $0x1e0] sm:$0xff]
        %v572 = vld [vmem:[%s345 + $0x1e8] sm:$0xff]
        %v573 = vld [vmem:[%s345 + $0x1f0] sm:$0xff]
        %v574 = vld [vmem:[%s345 + $0x1f8] sm:$0xff]
        %v575 = vld [vmem:[%s345 + $0x200] sm:$0xff]
        %v576 = vld [vmem:[%s345 + $0x208] sm:$0xff]
        %v577 = vld [vmem:[%s345 + $0x210] sm:$0xff]
        %v578 = vld [vmem:[%s345 + $0x218] sm:$0xff]
        %v579 = vld [vmem:[%s345 + $0x220] sm:$0xff]
        %v580 = vld [vmem:[%s345 + $0x228] sm:$0xff]
        %v581 = vld [vmem:[%s345 + $0x230] sm:$0xff]
        %v582 = vld [vmem:[%s345 + $0x238] sm:$0xff]
        %v583 = vld [vmem:[%s345 + $0x240] sm:$0xff]
        %v584 = vld [vmem:[%s345 + $0x248] sm:$0xff]
        %v585 = vld [vmem:[%s345 + $0x250] sm:$0xff]
        %v586 = vld [vmem:[%s345 + $0x258] sm:$0xff]
        %v587 = vld [vmem:[%s345 + $0x260] sm:$0xff]
        %v588 = vld [vmem:[%s345 + $0x268] sm:$0xff]
        %v589 = vld [vmem:[%s345 + $0x270] sm:$0xff]
        %v590 = vld [vmem:[%s345 + $0x278] sm:$0xff]
        %v591 = vld [vmem:[%s345 + $0x280] sm:$0xff]
        %v592 = vld [vmem:[%s345 + $0x288] sm:$0xff]
        %v593 = vld [vmem:[%s345 + $0x290] sm:$0xff]
        %v594 = vld [vmem:[%s345 + $0x298] sm:$0xff]
        %v595 = vld [vmem:[%s345 + $0x2a0] sm:$0xff]
        %v596 = vld [vmem:[%s345 + $0x2a8] sm:$0xff]
        %v597 = vld [vmem:[%s345 + $0x2b0] sm:$0xff]
        %v598 = vld [vmem:[%s345 + $0x2b8] sm:$0xff]
        %v599 = vld [vmem:[%s345 + $0x2c0] sm:$0xff]
        %v600 = vld [vmem:[%s345 + $0x2c8] sm:$0xff]
        %v601 = vld [vmem:[%s345 + $0x2d0] sm:$0xff]
        %v602 = vld [vmem:[%s345 + $0x2d8] sm:$0xff]
        %v603 = vld [vmem:[%s345 + $0x2e0] sm:$0xff]
        %v604 = vld [vmem:[%s345 + $0x2e8] sm:$0xff]
        %v605 = vld [vmem:[%s345 + $0x2f0] sm:$0xff]
        %v606 = vld [vmem:[%s345 + $0x2f8] sm:$0xff]
        %v607 = vld [vmem:[%s345 + $0x300] sm:$0xff]
        %v608 = vld [vmem:[%s345 + $0x308] sm:$0xff]
        %v609 = vld [vmem:[%s345 + $0x310] sm:$0xff]
        %v610 = vld [vmem:[%s345 + $0x318] sm:$0xff]
        %v611 = vld [vmem:[%s345 + $0x320] sm:$0xff]
        %v612 = vld [vmem:[%s345 + $0x328] sm:$0xff]
        %v613 = vld [vmem:[%s345 + $0x330] sm:$0xff]
        %v614 = vld [vmem:[%s345 + $0x338] sm:$0xff]
        %v615 = vld [vmem:[%s345 + $0x340] sm:$0xff]
        %v616 = vld [vmem:[%s345 + $0x348] sm:$0xff]
        %v617 = vld [vmem:[%s345 + $0x350] sm:$0xff]
        %v618 = vld [vmem:[%s345 + $0x358] sm:$0xff]
        %v619 = vld [vmem:[%s345 + $0x360] sm:$0xff]
        %v620 = vld [vmem:[%s345 + $0x368] sm:$0xff]
        %v621 = vld [vmem:[%s345 + $0x370] sm:$0xff]
        %v622 = vld [vmem:[%s345 + $0x378] sm:$0xff]
        %v623 = vld [vmem:[%s345 + $0x380] sm:$0xff]
        %v624 = vld [vmem:[%s345 + $0x388] sm:$0xff]
        %v625 = vld [vmem:[%s345 + $0x390] sm:$0xff]
        %v626 = vld [vmem:[%s345 + $0x398] sm:$0xff]
        %v627 = vld [vmem:[%s345 + $0x3a0] sm:$0xff]
        %v628 = vld [vmem:[%s345 + $0x3a8] sm:$0xff]
        %v629 = vld [vmem:[%s345 + $0x3b0] sm:$0xff]
        %v630 = vld [vmem:[%s345 + $0x3b8] sm:$0xff]
        %v631 = vld [vmem:[%s345 + $0x3c0] sm:$0xff]
        %v632 = vld [vmem:[%s345 + $0x3c8] sm:$0xff]
        %v633 = vld [vmem:[%s345 + $0x3d0] sm:$0xff]
        %v634 = vld [vmem:[%s345 + $0x3d8] sm:$0xff]
        %v635 = vld [vmem:[%s345 + $0x3e0] sm:$0xff]
        %v636 = vld [vmem:[%s345 + $0x3e8] sm:$0xff]
        %v637 = vld [vmem:[%s345 + $0x3f0] sm:$0xff]
        %v638 = vld [vmem:[%s345 + $0x3f8] sm:$0xff]
        %v639 = vld [vmem:[%s345 + $0x400] sm:$0xff]
        %v640 = vld [vmem:[%s345 + $0x408] sm:$0xff]
        %v641 = vld [vmem:[%s345 + $0x410] sm:$0xff]
        %v642 = vld [vmem:[%s345 + $0x418] sm:$0xff]
        %v643 = vld [vmem:[%s345 + $0x420] sm:$0xff]
        %v644 = vld [vmem:[%s345 + $0x428] sm:$0xff]
        %v645 = vld [vmem:[%s345 + $0x430] sm:$0xff]
        %v646 = vld [vmem:[%s345 + $0x438] sm:$0xff]
        %v647 = vld [vmem:[%s345 + $0x440] sm:$0xff]
        %v648 = vld [vmem:[%s345 + $0x448] sm:$0xff]
        %v649 = vld [vmem:[%s345 + $0x450] sm:$0xff]
        %v650 = vld [vmem:[%s345 + $0x458] sm:$0xff]
        %v651 = vld [vmem:[%s345 + $0x460] sm:$0xff]
        %v652 = vld [vmem:[%s345 + $0x468] sm:$0xff]
        %v653 = vld [vmem:[%s345 + $0x470] sm:$0xff]
        %v654 = vld [vmem:[%s345 + $0x478] sm:$0xff]
        %v655 = vld [vmem:[%s345 + $0x480] sm:$0xff]
        %v656 = vld [vmem:[%s345 + $0x488] sm:$0xff]
        %v657 = vld [vmem:[%s345 + $0x490] sm:$0xff]
        %v658 = vld [vmem:[%s345 + $0x498] sm:$0xff]
        %v659 = vld [vmem:[%s345 + $0x4a0] sm:$0xff]
        %v660 = vld [vmem:[%s345 + $0x4a8] sm:$0xff]
        %v661 = vld [vmem:[%s345 + $0x4b0] sm:$0xff]
        %v662 = vld [vmem:[%s345 + $0x4b8] sm:$0xff]
        %v663 = vld [vmem:[%s345 + $0x4c0] sm:$0xff]
        %v664 = vld [vmem:[%s345 + $0x4c8] sm:$0xff]
        %v665 = vld [vmem:[%s345 + $0x4d0] sm:$0xff]
        %v666 = vld [vmem:[%s345 + $0x4d8] sm:$0xff]
        %v667 = vld [vmem:[%s345 + $0x4e0] sm:$0xff]
        %v668 = vld [vmem:[%s345 + $0x4e8] sm:$0xff]
        %v669 = vld [vmem:[%s345 + $0x4f0] sm:$0xff]
        %v670 = vld [vmem:[%s345 + $0x4f8] sm:$0xff]
        %v671 = vld [vmem:[%s345 + $0x500] sm:$0xff]
        %v672 = vld [vmem:[%s345 + $0x508] sm:$0xff]
        %v673 = vld [vmem:[%s345 + $0x510] sm:$0xff]
        %v674 = vld [vmem:[%s345 + $0x518] sm:$0xff]
        %v675 = vld [vmem:[%s345 + $0x520] sm:$0xff]
        %v676 = vld [vmem:[%s345 + $0x528] sm:$0xff]
        %v677 = vld [vmem:[%s345 + $0x530] sm:$0xff]
        %v678 = vld [vmem:[%s345 + $0x538] sm:$0xff]
        %v679 = vld [vmem:[%s345 + $0x540] sm:$0xff]
        %v680 = vld [vmem:[%s345 + $0x548] sm:$0xff]
        %v681 = vld [vmem:[%s345 + $0x550] sm:$0xff]
        %v682 = vld [vmem:[%s345 + $0x558] sm:$0xff]
        %v683 = vld [vmem:[%s345 + $0x560] sm:$0xff]
        %v684 = vld [vmem:[%s345 + $0x568] sm:$0xff]
        %v685 = vld [vmem:[%s345 + $0x570] sm:$0xff]
        %v686 = vld [vmem:[%s345 + $0x578] sm:$0xff]
        %v687 = vld [vmem:[%s345 + $0x580] sm:$0xff]
        %v688 = vld [vmem:[%s345 + $0x588] sm:$0xff]
        %v689 = vld [vmem:[%s345 + $0x590] sm:$0xff]
        %v690 = vld [vmem:[%s345 + $0x598] sm:$0xff]
        %v691 = vld [vmem:[%s345 + $0x5a0] sm:$0xff]
        %v692 = vld [vmem:[%s345 + $0x5a8] sm:$0xff]
        %v693 = vld [vmem:[%s345 + $0x5b0] sm:$0xff]
        %v694 = vld [vmem:[%s345 + $0x5b8] sm:$0xff]
        %v695 = vld [vmem:[%s345 + $0x5c0] sm:$0xff]
        %v696 = vld [vmem:[%s345 + $0x5c8] sm:$0xff]
        %v697 = vld [vmem:[%s345 + $0x5d0] sm:$0xff]
        %v698 = vld [vmem:[%s345 + $0x5d8] sm:$0xff]
        %v699 = vld [vmem:[%s345 + $0x5e0] sm:$0xff]
        %v700 = vld [vmem:[%s345 + $0x5e8] sm:$0xff]
        %v701 = vld [vmem:[%s345 + $0x5f0] sm:$0xff]
        %v702 = vld [vmem:[%s345 + $0x5f8] sm:$0xff]
        %v703 = vld [vmem:[%s345 + $0x600] sm:$0xff]
        %v704 = vld [vmem:[%s345 + $0x608] sm:$0xff]
        %v705 = vld [vmem:[%s345 + $0x610] sm:$0xff]
        %v706 = vld [vmem:[%s345 + $0x618] sm:$0xff]
        %v707 = vld [vmem:[%s345 + $0x620] sm:$0xff]
        %v708 = vld [vmem:[%s345 + $0x628] sm:$0xff]
        %v709 = vld [vmem:[%s345 + $0x630] sm:$0xff]
        %v710 = vld [vmem:[%s345 + $0x638] sm:$0xff]
        %v711 = vld [vmem:[%s345 + $0x640] sm:$0xff]
        %v712 = vld [vmem:[%s345 + $0x648] sm:$0xff]
        %v713 = vld [vmem:[%s345 + $0x650] sm:$0xff]
        %v714 = vld [vmem:[%s345 + $0x658] sm:$0xff]
        %v715 = vld [vmem:[%s345 + $0x660] sm:$0xff]
        %v716 = vld [vmem:[%s345 + $0x668] sm:$0xff]
        %v717 = vld [vmem:[%s345 + $0x670] sm:$0xff]
        %v718 = vld [vmem:[%s345 + $0x678] sm:$0xff]
        %v719 = vld [vmem:[%s345 + $0x680] sm:$0xff]
        %v720 = vld [vmem:[%s345 + $0x688] sm:$0xff]
        %v721 = vld [vmem:[%s345 + $0x690] sm:$0xff]
        %v722 = vld [vmem:[%s345 + $0x698] sm:$0xff]
        %v723 = vld [vmem:[%s345 + $0x6a0] sm:$0xff]
        %v724 = vld [vmem:[%s345 + $0x6a8] sm:$0xff]
        %v725 = vld [vmem:[%s345 + $0x6b0] sm:$0xff]
        %v726 = vld [vmem:[%s345 + $0x6b8] sm:$0xff]
        %v727 = vld [vmem:[%s345 + $0x6c0] sm:$0xff]
        %v728 = vld [vmem:[%s345 + $0x6c8] sm:$0xff]
        %v729 = vld [vmem:[%s345 + $0x6d0] sm:$0xff]
        %v730 = vld [vmem:[%s345 + $0x6d8] sm:$0xff]
        %v731 = vld [vmem:[%s345 + $0x6e0] sm:$0xff]
        %v732 = vld [vmem:[%s345 + $0x6e8] sm:$0xff]
        %v733 = vld [vmem:[%s345 + $0x6f0] sm:$0xff]
        %v734 = vld [vmem:[%s345 + $0x6f8] sm:$0xff]
        %v735 = vld [vmem:[%s345 + $0x700] sm:$0xff]
        %v736 = vld [vmem:[%s345 + $0x708] sm:$0xff]
        %v737 = vld [vmem:[%s345 + $0x710] sm:$0xff]
        %v738 = vld [vmem:[%s345 + $0x718] sm:$0xff]
        %v739 = vld [vmem:[%s345 + $0x720] sm:$0xff]
        %v740 = vld [vmem:[%s345 + $0x728] sm:$0xff]
        %v741 = vld [vmem:[%s345 + $0x730] sm:$0xff]
        %v742 = vld [vmem:[%s345 + $0x738] sm:$0xff]
        %v743 = vld [vmem:[%s345 + $0x740] sm:$0xff]
        %v744 = vld [vmem:[%s345 + $0x748] sm:$0xff]
        %v745 = vld [vmem:[%s345 + $0x750] sm:$0xff]
        %v746 = vld [vmem:[%s345 + $0x758] sm:$0xff]
        %v747 = vld [vmem:[%s345 + $0x760] sm:$0xff]
        %v748 = vld [vmem:[%s345 + $0x768] sm:$0xff]
        %v749 = vld [vmem:[%s345 + $0x770] sm:$0xff]
        %v750 = vld [vmem:[%s345 + $0x778] sm:$0xff]
        %v751 = vld [vmem:[%s345 + $0x780] sm:$0xff]
        %v752 = vld [vmem:[%s345 + $0x788] sm:$0xff]
        %v753 = vld [vmem:[%s345 + $0x790] sm:$0xff]
        %v754 = vld [vmem:[%s345 + $0x798] sm:$0xff]
        %v755 = vld [vmem:[%s345 + $0x7a0] sm:$0xff]
        %v756 = vld [vmem:[%s345 + $0x7a8] sm:$0xff]
        %v757 = vld [vmem:[%s345 + $0x7b0] sm:$0xff]
        %v758 = vld [vmem:[%s345 + $0x7b8] sm:$0xff]
        %v759 = vld [vmem:[%s345 + $0x7c0] sm:$0xff]
        %v760 = vld [vmem:[%s345 + $0x7c8] sm:$0xff]
        %v761 = vld [vmem:[%s345 + $0x7d0] sm:$0xff]
        %v762 = vld [vmem:[%s345 + $0x7d8] sm:$0xff]
        %v763 = vld [vmem:[%s345 + $0x7e0] sm:$0xff]
        %v764 = vld [vmem:[%s345 + $0x7e8] sm:$0xff]
        %v765 = vld [vmem:[%s345 + $0x7f0] sm:$0xff]
        %v766 = vld [vmem:[%s345 + $0x7f8] sm:$0xff]
        %v799 = vunpack.c.l.b16 %v479
        %v800 = vunpack.c.h.b16 %v479
        %v801 = vunpack.c.l.b16 %v480
        %v802 = vunpack.c.h.b16 %v480
        %v803 = vunpack.c.l.b16 %v481
        %v804 = vunpack.c.h.b16 %v481
        %v805 = vunpack.c.l.b16 %v482
        %v806 = vunpack.c.h.b16 %v482
        %v807 = vunpack.c.l.b16 %v483
        %v808 = vunpack.c.h.b16 %v483
        %v809 = vunpack.c.l.b16 %v484
        %v810 = vunpack.c.h.b16 %v484
        %v811 = vunpack.c.l.b16 %v485
        %v812 = vunpack.c.h.b16 %v485
        %v813 = vunpack.c.l.b16 %v486
        %v814 = vunpack.c.h.b16 %v486
        %v815 = vunpack.c.l.b16 %v487
        %v816 = vunpack.c.h.b16 %v487
        %v817 = vunpack.c.l.b16 %v488
        %v818 = vunpack.c.h.b16 %v488
        %v819 = vunpack.c.l.b16 %v489
        %v820 = vunpack.c.h.b16 %v489
        %v821 = vunpack.c.l.b16 %v490
        %v822 = vunpack.c.h.b16 %v490
        %v823 = vunpack.c.l.b16 %v491
        %v824 = vunpack.c.h.b16 %v491
        %v825 = vunpack.c.l.b16 %v492
        %v826 = vunpack.c.h.b16 %v492
        %v827 = vunpack.c.l.b16 %v493
        %v828 = vunpack.c.h.b16 %v493
        %v829 = vunpack.c.l.b16 %v494
        %v830 = vunpack.c.h.b16 %v494
        %v831 = vunpack.c.l.b16 %v495
        %v832 = vunpack.c.h.b16 %v495
        %v833 = vunpack.c.l.b16 %v496
        %v834 = vunpack.c.h.b16 %v496
        %v835 = vunpack.c.l.b16 %v497
        %v836 = vunpack.c.h.b16 %v497
        %v837 = vunpack.c.l.b16 %v498
        %v838 = vunpack.c.h.b16 %v498
        %v839 = vunpack.c.l.b16 %v499
        %v840 = vunpack.c.h.b16 %v499
        %v841 = vunpack.c.l.b16 %v500
        %v842 = vunpack.c.h.b16 %v500
        %v843 = vunpack.c.l.b16 %v501
        %v844 = vunpack.c.h.b16 %v501
        %v845 = vunpack.c.l.b16 %v502
        %v846 = vunpack.c.h.b16 %v502
        %v847 = vunpack.c.l.b16 %v503
        %v848 = vunpack.c.h.b16 %v503
        %v849 = vunpack.c.l.b16 %v504
        %v850 = vunpack.c.h.b16 %v504
        %v851 = vunpack.c.l.b16 %v505
        %v852 = vunpack.c.h.b16 %v505
        %v853 = vunpack.c.l.b16 %v506
        %v854 = vunpack.c.h.b16 %v506
        %v855 = vunpack.c.l.b16 %v507
        %v856 = vunpack.c.h.b16 %v507
        %v857 = vunpack.c.l.b16 %v508
        %v858 = vunpack.c.h.b16 %v508
        %v859 = vunpack.c.l.b16 %v509
        %v860 = vunpack.c.h.b16 %v509
        %v861 = vunpack.c.l.b16 %v510
        %v862 = vunpack.c.h.b16 %v510
        %v863 = vpack.c.b16 %v807, %v799
        %v864 = vpack.c.b16 %v808, %v800
        %v865 = vpack.c.b16 %v809, %v801
        %v866 = vpack.c.b16 %v810, %v802
        %v867 = vpack.c.b16 %v811, %v803
        %v868 = vpack.c.b16 %v812, %v804
        %v869 = vpack.c.b16 %v813, %v805
        %v870 = vpack.c.b16 %v814, %v806
        %v871 = vpack.c.b16 %v823, %v815
        %v872 = vpack.c.b16 %v824, %v816
        %v873 = vpack.c.b16 %v825, %v817
        %v874 = vpack.c.b16 %v826, %v818
        %v875 = vpack.c.b16 %v827, %v819
        %v876 = vpack.c.b16 %v828, %v820
        %v877 = vpack.c.b16 %v829, %v821
        %v878 = vpack.c.b16 %v830, %v822
        %v879 = vpack.c.b16 %v839, %v831
        %v880 = vpack.c.b16 %v840, %v832
        %v881 = vpack.c.b16 %v841, %v833
        %v882 = vpack.c.b16 %v842, %v834
        %v883 = vpack.c.b16 %v843, %v835
        %v884 = vpack.c.b16 %v844, %v836
        %v885 = vpack.c.b16 %v845, %v837
        %v886 = vpack.c.b16 %v846, %v838
        %v887 = vpack.c.b16 %v855, %v847
        %v888 = vpack.c.b16 %v856, %v848
        %v889 = vpack.c.b16 %v857, %v849
        %v890 = vpack.c.b16 %v858, %v850
        %v891 = vpack.c.b16 %v859, %v851
        %v892 = vpack.c.b16 %v860, %v852
        %v893 = vpack.c.b16 %v861, %v853
        %v894 = vpack.c.b16 %v862, %v854
        %v1183 = vunpack.c.l.b16 %v511
        %v1184 = vunpack.c.h.b16 %v511
        %v1185 = vunpack.c.l.b16 %v512
        %v1186 = vunpack.c.h.b16 %v512
        %v1187 = vunpack.c.l.b16 %v513
        %v1188 = vunpack.c.h.b16 %v513
        %v1189 = vunpack.c.l.b16 %v514
        %v1190 = vunpack.c.h.b16 %v514
        %v1191 = vunpack.c.l.b16 %v515
        %v1192 = vunpack.c.h.b16 %v515
        %v1193 = vunpack.c.l.b16 %v516
        %v1194 = vunpack.c.h.b16 %v516
        %v1195 = vunpack.c.l.b16 %v517
        %v1196 = vunpack.c.h.b16 %v517
        %v1197 = vunpack.c.l.b16 %v518
        %v1198 = vunpack.c.h.b16 %v518
        %v1199 = vunpack.c.l.b16 %v519
        %v1200 = vunpack.c.h.b16 %v519
        %v1201 = vunpack.c.l.b16 %v520
        %v1202 = vunpack.c.h.b16 %v520
        %v1203 = vunpack.c.l.b16 %v521
        %v1204 = vunpack.c.h.b16 %v521
        %v1205 = vunpack.c.l.b16 %v522
        %v1206 = vunpack.c.h.b16 %v522
        %v1207 = vunpack.c.l.b16 %v523
        %v1208 = vunpack.c.h.b16 %v523
        %v1209 = vunpack.c.l.b16 %v524
        %v1210 = vunpack.c.h.b16 %v524
        %v1211 = vunpack.c.l.b16 %v525
        %v1212 = vunpack.c.h.b16 %v525
        %v1213 = vunpack.c.l.b16 %v526
        %v1214 = vunpack.c.h.b16 %v526
        %v1215 = vunpack.c.l.b16 %v527
        %v1216 = vunpack.c.h.b16 %v527
        %v1217 = vunpack.c.l.b16 %v528
        %v1218 = vunpack.c.h.b16 %v528
        %v1219 = vunpack.c.l.b16 %v529
        %v1220 = vunpack.c.h.b16 %v529
        %v1221 = vunpack.c.l.b16 %v530
        %v1222 = vunpack.c.h.b16 %v530
        %v1223 = vunpack.c.l.b16 %v531
        %v1224 = vunpack.c.h.b16 %v531
        %v1225 = vunpack.c.l.b16 %v532
        %v1226 = vunpack.c.h.b16 %v532
        %v1227 = vunpack.c.l.b16 %v533
        %v1228 = vunpack.c.h.b16 %v533
        %v1229 = vunpack.c.l.b16 %v534
        %v1230 = vunpack.c.h.b16 %v534
        %v1231 = vunpack.c.l.b16 %v535
        %v1232 = vunpack.c.h.b16 %v535
        %v1233 = vunpack.c.l.b16 %v536
        %v1234 = vunpack.c.h.b16 %v536
        %v1235 = vunpack.c.l.b16 %v537
        %v1236 = vunpack.c.h.b16 %v537
        %v1237 = vunpack.c.l.b16 %v538
        %v1238 = vunpack.c.h.b16 %v538
        %v1239 = vunpack.c.l.b16 %v539
        %v1240 = vunpack.c.h.b16 %v539
        %v1241 = vunpack.c.l.b16 %v540
        %v1242 = vunpack.c.h.b16 %v540
        %v1243 = vunpack.c.l.b16 %v541
        %v1244 = vunpack.c.h.b16 %v541
        %v1245 = vunpack.c.l.b16 %v542
        %v1246 = vunpack.c.h.b16 %v542
        %v1247 = vunpack.c.l.b16 %v543
        %v1248 = vunpack.c.h.b16 %v543
        %v1249 = vunpack.c.l.b16 %v544
        %v1250 = vunpack.c.h.b16 %v544
        %v1251 = vunpack.c.l.b16 %v545
        %v1252 = vunpack.c.h.b16 %v545
        %v1253 = vunpack.c.l.b16 %v546
        %v1254 = vunpack.c.h.b16 %v546
        %v1255 = vunpack.c.l.b16 %v547
        %v1256 = vunpack.c.h.b16 %v547
        %v1257 = vunpack.c.l.b16 %v548
        %v1258 = vunpack.c.h.b16 %v548
        %v1259 = vunpack.c.l.b16 %v549
        %v1260 = vunpack.c.h.b16 %v549
        %v1261 = vunpack.c.l.b16 %v550
        %v1262 = vunpack.c.h.b16 %v550
        %v1263 = vunpack.c.l.b16 %v551
        %v1264 = vunpack.c.h.b16 %v551
        %v1265 = vunpack.c.l.b16 %v552
        %v1266 = vunpack.c.h.b16 %v552
        %v1267 = vunpack.c.l.b16 %v553
        %v1268 = vunpack.c.h.b16 %v553
        %v1269 = vunpack.c.l.b16 %v554
        %v1270 = vunpack.c.h.b16 %v554
        %v1271 = vunpack.c.l.b16 %v555
        %v1272 = vunpack.c.h.b16 %v555
        %v1273 = vunpack.c.l.b16 %v556
        %v1274 = vunpack.c.h.b16 %v556
        %v1275 = vunpack.c.l.b16 %v557
        %v1276 = vunpack.c.h.b16 %v557
        %v1277 = vunpack.c.l.b16 %v558
        %v1278 = vunpack.c.h.b16 %v558
        %v1279 = vunpack.c.l.b16 %v559
        %v1280 = vunpack.c.h.b16 %v559
        %v1281 = vunpack.c.l.b16 %v560
        %v1282 = vunpack.c.h.b16 %v560
        %v1283 = vunpack.c.l.b16 %v561
        %v1284 = vunpack.c.h.b16 %v561
        %v1285 = vunpack.c.l.b16 %v562
        %v1286 = vunpack.c.h.b16 %v562
        %v1287 = vunpack.c.l.b16 %v563
        %v1288 = vunpack.c.h.b16 %v563
        %v1289 = vunpack.c.l.b16 %v564
        %v1290 = vunpack.c.h.b16 %v564
        %v1291 = vunpack.c.l.b16 %v565
        %v1292 = vunpack.c.h.b16 %v565
        %v1293 = vunpack.c.l.b16 %v566
        %v1294 = vunpack.c.h.b16 %v566
        %v1295 = vunpack.c.l.b16 %v567
        %v1296 = vunpack.c.h.b16 %v567
        %v1297 = vunpack.c.l.b16 %v568
        %v1298 = vunpack.c.h.b16 %v568
        %v1299 = vunpack.c.l.b16 %v569
        %v1300 = vunpack.c.h.b16 %v569
        %v1301 = vunpack.c.l.b16 %v570
        %v1302 = vunpack.c.h.b16 %v570
        %v1303 = vunpack.c.l.b16 %v571
        %v1304 = vunpack.c.h.b16 %v571
        %v1305 = vunpack.c.l.b16 %v572
        %v1306 = vunpack.c.h.b16 %v572
        %v1307 = vunpack.c.l.b16 %v573
        %v1308 = vunpack.c.h.b16 %v573
        %v1309 = vunpack.c.l.b16 %v574
        %v1310 = vunpack.c.h.b16 %v574
        %v1311 = vunpack.c.l.b16 %v575
        %v1312 = vunpack.c.h.b16 %v575
        %v1313 = vunpack.c.l.b16 %v576
        %v1314 = vunpack.c.h.b16 %v576
        %v1315 = vunpack.c.l.b16 %v577
        %v1316 = vunpack.c.h.b16 %v577
        %v1317 = vunpack.c.l.b16 %v578
        %v1318 = vunpack.c.h.b16 %v578
        %v1319 = vunpack.c.l.b16 %v579
        %v1320 = vunpack.c.h.b16 %v579
        %v1321 = vunpack.c.l.b16 %v580
        %v1322 = vunpack.c.h.b16 %v580
        %v1323 = vunpack.c.l.b16 %v581
        %v1324 = vunpack.c.h.b16 %v581
        %v1325 = vunpack.c.l.b16 %v582
        %v1326 = vunpack.c.h.b16 %v582
        %v1327 = vunpack.c.l.b16 %v583
        %v1328 = vunpack.c.h.b16 %v583
        %v1329 = vunpack.c.l.b16 %v584
        %v1330 = vunpack.c.h.b16 %v584
        %v1331 = vunpack.c.l.b16 %v585
        %v1332 = vunpack.c.h.b16 %v585
        %v1333 = vunpack.c.l.b16 %v586
        %v1334 = vunpack.c.h.b16 %v586
        %v1335 = vunpack.c.l.b16 %v587
        %v1336 = vunpack.c.h.b16 %v587
        %v1337 = vunpack.c.l.b16 %v588
        %v1338 = vunpack.c.h.b16 %v588
        %v1339 = vunpack.c.l.b16 %v589
        %v1340 = vunpack.c.h.b16 %v589
        %v1341 = vunpack.c.l.b16 %v590
        %v1342 = vunpack.c.h.b16 %v590
        %v1343 = vunpack.c.l.b16 %v591
        %v1344 = vunpack.c.h.b16 %v591
        %v1345 = vunpack.c.l.b16 %v592
        %v1346 = vunpack.c.h.b16 %v592
        %v1347 = vunpack.c.l.b16 %v593
        %v1348 = vunpack.c.h.b16 %v593
        %v1349 = vunpack.c.l.b16 %v594
        %v1350 = vunpack.c.h.b16 %v594
        %v1351 = vunpack.c.l.b16 %v595
        %v1352 = vunpack.c.h.b16 %v595
        %v1353 = vunpack.c.l.b16 %v596
        %v1354 = vunpack.c.h.b16 %v596
        %v1355 = vunpack.c.l.b16 %v597
        %v1356 = vunpack.c.h.b16 %v597
        %v1357 = vunpack.c.l.b16 %v598
        %v1358 = vunpack.c.h.b16 %v598
        %v1359 = vunpack.c.l.b16 %v599
        %v1360 = vunpack.c.h.b16 %v599
        %v1361 = vunpack.c.l.b16 %v600
        %v1362 = vunpack.c.h.b16 %v600
        %v1363 = vunpack.c.l.b16 %v601
        %v1364 = vunpack.c.h.b16 %v601
        %v1365 = vunpack.c.l.b16 %v602
        %v1366 = vunpack.c.h.b16 %v602
        %v1367 = vunpack.c.l.b16 %v603
        %v1368 = vunpack.c.h.b16 %v603
        %v1369 = vunpack.c.l.b16 %v604
        %v1370 = vunpack.c.h.b16 %v604
        %v1371 = vunpack.c.l.b16 %v605
        %v1372 = vunpack.c.h.b16 %v605
        %v1373 = vunpack.c.l.b16 %v606
        %v1374 = vunpack.c.h.b16 %v606
        %v1375 = vunpack.c.l.b16 %v607
        %v1376 = vunpack.c.h.b16 %v607
        %v1377 = vunpack.c.l.b16 %v608
        %v1378 = vunpack.c.h.b16 %v608
        %v1379 = vunpack.c.l.b16 %v609
        %v1380 = vunpack.c.h.b16 %v609
        %v1381 = vunpack.c.l.b16 %v610
        %v1382 = vunpack.c.h.b16 %v610
        %v1383 = vunpack.c.l.b16 %v611
        %v1384 = vunpack.c.h.b16 %v611
        %v1385 = vunpack.c.l.b16 %v612
        %v1386 = vunpack.c.h.b16 %v612
        %v1387 = vunpack.c.l.b16 %v613
        %v1388 = vunpack.c.h.b16 %v613
        %v1389 = vunpack.c.l.b16 %v614
        %v1390 = vunpack.c.h.b16 %v614
        %v1391 = vunpack.c.l.b16 %v615
        %v1392 = vunpack.c.h.b16 %v615
        %v1393 = vunpack.c.l.b16 %v616
        %v1394 = vunpack.c.h.b16 %v616
        %v1395 = vunpack.c.l.b16 %v617
        %v1396 = vunpack.c.h.b16 %v617
        %v1397 = vunpack.c.l.b16 %v618
        %v1398 = vunpack.c.h.b16 %v618
        %v1399 = vunpack.c.l.b16 %v619
        %v1400 = vunpack.c.h.b16 %v619
        %v1401 = vunpack.c.l.b16 %v620
        %v1402 = vunpack.c.h.b16 %v620
        %v1403 = vunpack.c.l.b16 %v621
        %v1404 = vunpack.c.h.b16 %v621
        %v1405 = vunpack.c.l.b16 %v622
        %v1406 = vunpack.c.h.b16 %v622
        %v1407 = vunpack.c.l.b16 %v623
        %v1408 = vunpack.c.h.b16 %v623
        %v1409 = vunpack.c.l.b16 %v624
        %v1410 = vunpack.c.h.b16 %v624
        %v1411 = vunpack.c.l.b16 %v625
        %v1412 = vunpack.c.h.b16 %v625
        %v1413 = vunpack.c.l.b16 %v626
        %v1414 = vunpack.c.h.b16 %v626
        %v1415 = vunpack.c.l.b16 %v627
        %v1416 = vunpack.c.h.b16 %v627
        %v1417 = vunpack.c.l.b16 %v628
        %v1418 = vunpack.c.h.b16 %v628
        %v1419 = vunpack.c.l.b16 %v629
        %v1420 = vunpack.c.h.b16 %v629
        %v1421 = vunpack.c.l.b16 %v630
        %v1422 = vunpack.c.h.b16 %v630
        %v1423 = vunpack.c.l.b16 %v631
        %v1424 = vunpack.c.h.b16 %v631
        %v1425 = vunpack.c.l.b16 %v632
        %v1426 = vunpack.c.h.b16 %v632
        %v1427 = vunpack.c.l.b16 %v633
        %v1428 = vunpack.c.h.b16 %v633
        %v1429 = vunpack.c.l.b16 %v634
        %v1430 = vunpack.c.h.b16 %v634
        %v1431 = vunpack.c.l.b16 %v635
        %v1432 = vunpack.c.h.b16 %v635
        %v1433 = vunpack.c.l.b16 %v636
        %v1434 = vunpack.c.h.b16 %v636
        %v1435 = vunpack.c.l.b16 %v637
        %v1436 = vunpack.c.h.b16 %v637
        %v1437 = vunpack.c.l.b16 %v638
        %v1438 = vunpack.c.h.b16 %v638
        %v1439 = vunpack.c.l.b16 %v639
        %v1440 = vunpack.c.h.b16 %v639
        %v1441 = vunpack.c.l.b16 %v640
        %v1442 = vunpack.c.h.b16 %v640
        %v1443 = vunpack.c.l.b16 %v641
        %v1444 = vunpack.c.h.b16 %v641
        %v1445 = vunpack.c.l.b16 %v642
        %v1446 = vunpack.c.h.b16 %v642
        %v1447 = vunpack.c.l.b16 %v643
        %v1448 = vunpack.c.h.b16 %v643
        %v1449 = vunpack.c.l.b16 %v644
        %v1450 = vunpack.c.h.b16 %v644
        %v1451 = vunpack.c.l.b16 %v645
        %v1452 = vunpack.c.h.b16 %v645
        %v1453 = vunpack.c.l.b16 %v646
        %v1454 = vunpack.c.h.b16 %v646
        %v1455 = vunpack.c.l.b16 %v647
        %v1456 = vunpack.c.h.b16 %v647
        %v1457 = vunpack.c.l.b16 %v648
        %v1458 = vunpack.c.h.b16 %v648
        %v1459 = vunpack.c.l.b16 %v649
        %v1460 = vunpack.c.h.b16 %v649
        %v1461 = vunpack.c.l.b16 %v650
        %v1462 = vunpack.c.h.b16 %v650
        %v1463 = vunpack.c.l.b16 %v651
        %v1464 = vunpack.c.h.b16 %v651
        %v1465 = vunpack.c.l.b16 %v652
        %v1466 = vunpack.c.h.b16 %v652
        %v1467 = vunpack.c.l.b16 %v653
        %v1468 = vunpack.c.h.b16 %v653
        %v1469 = vunpack.c.l.b16 %v654
        %v1470 = vunpack.c.h.b16 %v654
        %v1471 = vunpack.c.l.b16 %v655
        %v1472 = vunpack.c.h.b16 %v655
        %v1473 = vunpack.c.l.b16 %v656
        %v1474 = vunpack.c.h.b16 %v656
        %v1475 = vunpack.c.l.b16 %v657
        %v1476 = vunpack.c.h.b16 %v657
        %v1477 = vunpack.c.l.b16 %v658
        %v1478 = vunpack.c.h.b16 %v658
        %v1479 = vunpack.c.l.b16 %v659
        %v1480 = vunpack.c.h.b16 %v659
        %v1481 = vunpack.c.l.b16 %v660
        %v1482 = vunpack.c.h.b16 %v660
        %v1483 = vunpack.c.l.b16 %v661
        %v1484 = vunpack.c.h.b16 %v661
        %v1485 = vunpack.c.l.b16 %v662
        %v1486 = vunpack.c.h.b16 %v662
        %v1487 = vunpack.c.l.b16 %v663
        %v1488 = vunpack.c.h.b16 %v663
        %v1489 = vunpack.c.l.b16 %v664
        %v1490 = vunpack.c.h.b16 %v664
        %v1491 = vunpack.c.l.b16 %v665
        %v1492 = vunpack.c.h.b16 %v665
        %v1493 = vunpack.c.l.b16 %v666
        %v1494 = vunpack.c.h.b16 %v666
        %v1495 = vunpack.c.l.b16 %v667
        %v1496 = vunpack.c.h.b16 %v667
        %v1497 = vunpack.c.l.b16 %v668
        %v1498 = vunpack.c.h.b16 %v668
        %v1499 = vunpack.c.l.b16 %v669
        %v1500 = vunpack.c.h.b16 %v669
        %v1501 = vunpack.c.l.b16 %v670
        %v1502 = vunpack.c.h.b16 %v670
        %v1503 = vunpack.c.l.b16 %v671
        %v1504 = vunpack.c.h.b16 %v671
        %v1505 = vunpack.c.l.b16 %v672
        %v1506 = vunpack.c.h.b16 %v672
        %v1507 = vunpack.c.l.b16 %v673
        %v1508 = vunpack.c.h.b16 %v673
        %v1509 = vunpack.c.l.b16 %v674
        %v1510 = vunpack.c.h.b16 %v674
        %v1511 = vunpack.c.l.b16 %v675
        %v1512 = vunpack.c.h.b16 %v675
        %v1513 = vunpack.c.l.b16 %v676
        %v1514 = vunpack.c.h.b16 %v676
        %v1515 = vunpack.c.l.b16 %v677
        %v1516 = vunpack.c.h.b16 %v677
        %v1517 = vunpack.c.l.b16 %v678
        %v1518 = vunpack.c.h.b16 %v678
        %v1519 = vunpack.c.l.b16 %v679
        %v1520 = vunpack.c.h.b16 %v679
        %v1521 = vunpack.c.l.b16 %v680
        %v1522 = vunpack.c.h.b16 %v680
        %v1523 = vunpack.c.l.b16 %v681
        %v1524 = vunpack.c.h.b16 %v681
        %v1525 = vunpack.c.l.b16 %v682
        %v1526 = vunpack.c.h.b16 %v682
        %v1527 = vunpack.c.l.b16 %v683
        %v1528 = vunpack.c.h.b16 %v683
        %v1529 = vunpack.c.l.b16 %v684
        %v1530 = vunpack.c.h.b16 %v684
        %v1531 = vunpack.c.l.b16 %v685
        %v1532 = vunpack.c.h.b16 %v685
        %v1533 = vunpack.c.l.b16 %v686
        %v1534 = vunpack.c.h.b16 %v686
        %v1535 = vunpack.c.l.b16 %v687
        %v1536 = vunpack.c.h.b16 %v687
        %v1537 = vunpack.c.l.b16 %v688
        %v1538 = vunpack.c.h.b16 %v688
        %v1539 = vunpack.c.l.b16 %v689
        %v1540 = vunpack.c.h.b16 %v689
        %v1541 = vunpack.c.l.b16 %v690
        %v1542 = vunpack.c.h.b16 %v690
        %v1543 = vunpack.c.l.b16 %v691
        %v1544 = vunpack.c.h.b16 %v691
        %v1545 = vunpack.c.l.b16 %v692
        %v1546 = vunpack.c.h.b16 %v692
        %v1547 = vunpack.c.l.b16 %v693
        %v1548 = vunpack.c.h.b16 %v693
        %v1549 = vunpack.c.l.b16 %v694
        %v1550 = vunpack.c.h.b16 %v694
        %v1551 = vunpack.c.l.b16 %v695
        %v1552 = vunpack.c.h.b16 %v695
        %v1553 = vunpack.c.l.b16 %v696
        %v1554 = vunpack.c.h.b16 %v696
        %v1555 = vunpack.c.l.b16 %v697
        %v1556 = vunpack.c.h.b16 %v697
        %v1557 = vunpack.c.l.b16 %v698
        %v1558 = vunpack.c.h.b16 %v698
        %v1559 = vunpack.c.l.b16 %v699
        %v1560 = vunpack.c.h.b16 %v699
        %v1561 = vunpack.c.l.b16 %v700
        %v1562 = vunpack.c.h.b16 %v700
        %v1563 = vunpack.c.l.b16 %v701
        %v1564 = vunpack.c.h.b16 %v701
        %v1565 = vunpack.c.l.b16 %v702
        %v1566 = vunpack.c.h.b16 %v702
        %v1567 = vunpack.c.l.b16 %v703
        %v1568 = vunpack.c.h.b16 %v703
        %v1569 = vunpack.c.l.b16 %v704
        %v1570 = vunpack.c.h.b16 %v704
        %v1571 = vunpack.c.l.b16 %v705
        %v1572 = vunpack.c.h.b16 %v705
        %v1573 = vunpack.c.l.b16 %v706
        %v1574 = vunpack.c.h.b16 %v706
        %v1575 = vunpack.c.l.b16 %v707
        %v1576 = vunpack.c.h.b16 %v707
        %v1577 = vunpack.c.l.b16 %v708
        %v1578 = vunpack.c.h.b16 %v708
        %v1579 = vunpack.c.l.b16 %v709
        %v1580 = vunpack.c.h.b16 %v709
        %v1581 = vunpack.c.l.b16 %v710
        %v1582 = vunpack.c.h.b16 %v710
        %v1583 = vunpack.c.l.b16 %v711
        %v1584 = vunpack.c.h.b16 %v711
        %v1585 = vunpack.c.l.b16 %v712
        %v1586 = vunpack.c.h.b16 %v712
        %v1587 = vunpack.c.l.b16 %v713
        %v1588 = vunpack.c.h.b16 %v713
        %v1589 = vunpack.c.l.b16 %v714
        %v1590 = vunpack.c.h.b16 %v714
        %v1591 = vunpack.c.l.b16 %v715
        %v1592 = vunpack.c.h.b16 %v715
        %v1593 = vunpack.c.l.b16 %v716
        %v1594 = vunpack.c.h.b16 %v716
        %v1595 = vunpack.c.l.b16 %v717
        %v1596 = vunpack.c.h.b16 %v717
        %v1597 = vunpack.c.l.b16 %v718
        %v1598 = vunpack.c.h.b16 %v718
        %v1599 = vunpack.c.l.b16 %v719
        %v1600 = vunpack.c.h.b16 %v719
        %v1601 = vunpack.c.l.b16 %v720
        %v1602 = vunpack.c.h.b16 %v720
        %v1603 = vunpack.c.l.b16 %v721
        %v1604 = vunpack.c.h.b16 %v721
        %v1605 = vunpack.c.l.b16 %v722
        %v1606 = vunpack.c.h.b16 %v722
        %v1607 = vunpack.c.l.b16 %v723
        %v1608 = vunpack.c.h.b16 %v723
        %v1609 = vunpack.c.l.b16 %v724
        %v1610 = vunpack.c.h.b16 %v724
        %v1611 = vunpack.c.l.b16 %v725
        %v1612 = vunpack.c.h.b16 %v725
        %v1613 = vunpack.c.l.b16 %v726
        %v1614 = vunpack.c.h.b16 %v726
        %v1615 = vunpack.c.l.b16 %v727
        %v1616 = vunpack.c.h.b16 %v727
        %v1617 = vunpack.c.l.b16 %v728
        %v1618 = vunpack.c.h.b16 %v728
        %v1619 = vunpack.c.l.b16 %v729
        %v1620 = vunpack.c.h.b16 %v729
        %v1621 = vunpack.c.l.b16 %v730
        %v1622 = vunpack.c.h.b16 %v730
        %v1623 = vunpack.c.l.b16 %v731
        %v1624 = vunpack.c.h.b16 %v731
        %v1625 = vunpack.c.l.b16 %v732
        %v1626 = vunpack.c.h.b16 %v732
        %v1627 = vunpack.c.l.b16 %v733
        %v1628 = vunpack.c.h.b16 %v733
        %v1629 = vunpack.c.l.b16 %v734
        %v1630 = vunpack.c.h.b16 %v734
        %v1631 = vunpack.c.l.b16 %v735
        %v1632 = vunpack.c.h.b16 %v735
        %v1633 = vunpack.c.l.b16 %v736
        %v1634 = vunpack.c.h.b16 %v736
        %v1635 = vunpack.c.l.b16 %v737
        %v1636 = vunpack.c.h.b16 %v737
        %v1637 = vunpack.c.l.b16 %v738
        %v1638 = vunpack.c.h.b16 %v738
        %v1639 = vunpack.c.l.b16 %v739
        %v1640 = vunpack.c.h.b16 %v739
        %v1641 = vunpack.c.l.b16 %v740
        %v1642 = vunpack.c.h.b16 %v740
        %v1643 = vunpack.c.l.b16 %v741
        %v1644 = vunpack.c.h.b16 %v741
        %v1645 = vunpack.c.l.b16 %v742
        %v1646 = vunpack.c.h.b16 %v742
        %v1647 = vunpack.c.l.b16 %v743
        %v1648 = vunpack.c.h.b16 %v743
        %v1649 = vunpack.c.l.b16 %v744
        %v1650 = vunpack.c.h.b16 %v744
        %v1651 = vunpack.c.l.b16 %v745
        %v1652 = vunpack.c.h.b16 %v745
        %v1653 = vunpack.c.l.b16 %v746
        %v1654 = vunpack.c.h.b16 %v746
        %v1655 = vunpack.c.l.b16 %v747
        %v1656 = vunpack.c.h.b16 %v747
        %v1657 = vunpack.c.l.b16 %v748
        %v1658 = vunpack.c.h.b16 %v748
        %v1659 = vunpack.c.l.b16 %v749
        %v1660 = vunpack.c.h.b16 %v749
        %v1661 = vunpack.c.l.b16 %v750
        %v1662 = vunpack.c.h.b16 %v750
        %v1663 = vunpack.c.l.b16 %v751
        %v1664 = vunpack.c.h.b16 %v751
        %v1665 = vunpack.c.l.b16 %v752
        %v1666 = vunpack.c.h.b16 %v752
        %v1667 = vunpack.c.l.b16 %v753
        %v1668 = vunpack.c.h.b16 %v753
        %v1669 = vunpack.c.l.b16 %v754
        %v1670 = vunpack.c.h.b16 %v754
        %v1671 = vunpack.c.l.b16 %v755
        %v1672 = vunpack.c.h.b16 %v755
        %v1673 = vunpack.c.l.b16 %v756
        %v1674 = vunpack.c.h.b16 %v756
        %v1675 = vunpack.c.l.b16 %v757
        %v1676 = vunpack.c.h.b16 %v757
        %v1677 = vunpack.c.l.b16 %v758
        %v1678 = vunpack.c.h.b16 %v758
        %v1679 = vunpack.c.l.b16 %v759
        %v1680 = vunpack.c.h.b16 %v759
        %v1681 = vunpack.c.l.b16 %v760
        %v1682 = vunpack.c.h.b16 %v760
        %v1683 = vunpack.c.l.b16 %v761
        %v1684 = vunpack.c.h.b16 %v761
        %v1685 = vunpack.c.l.b16 %v762
        %v1686 = vunpack.c.h.b16 %v762
        %v1687 = vunpack.c.l.b16 %v763
        %v1688 = vunpack.c.h.b16 %v763
        %v1689 = vunpack.c.l.b16 %v764
        %v1690 = vunpack.c.h.b16 %v764
        %v1691 = vunpack.c.l.b16 %v765
        %v1692 = vunpack.c.h.b16 %v765
        %v1693 = vunpack.c.l.b16 %v766
        %v1694 = vunpack.c.h.b16 %v766
        %v1695 = vpack.c.b16 %v1187, %v1183
        %v1696 = vpack.c.b16 %v1188, %v1184
        %v1697 = vpack.c.b16 %v1189, %v1185
        %v1698 = vpack.c.b16 %v1190, %v1186
        %v1699 = vpack.c.b16 %v1195, %v1191
        %v1700 = vpack.c.b16 %v1196, %v1192
        %v1701 = vpack.c.b16 %v1197, %v1193
        %v1702 = vpack.c.b16 %v1198, %v1194
        %v1703 = vpack.c.b16 %v1203, %v1199
        %v1704 = vpack.c.b16 %v1204, %v1200
        %v1705 = vpack.c.b16 %v1205, %v1201
        %v1706 = vpack.c.b16 %v1206, %v1202
        %v1707 = vpack.c.b16 %v1211, %v1207
        %v1708 = vpack.c.b16 %v1212, %v1208
        %v1709 = vpack.c.b16 %v1213, %v1209
        %v1710 = vpack.c.b16 %v1214, %v1210
        %v1711 = vpack.c.b16 %v1219, %v1215
        %v1712 = vpack.c.b16 %v1220, %v1216
        %v1713 = vpack.c.b16 %v1221, %v1217
        %v1714 = vpack.c.b16 %v1222, %v1218
        %v1715 = vpack.c.b16 %v1227, %v1223
        %v1716 = vpack.c.b16 %v1228, %v1224
        %v1717 = vpack.c.b16 %v1229, %v1225
        %v1718 = vpack.c.b16 %v1230, %v1226
        %v1719 = vpack.c.b16 %v1235, %v1231
        %v1720 = vpack.c.b16 %v1236, %v1232
        %v1721 = vpack.c.b16 %v1237, %v1233
        %v1722 = vpack.c.b16 %v1238, %v1234
        %v1723 = vpack.c.b16 %v1243, %v1239
        %v1724 = vpack.c.b16 %v1244, %v1240
        %v1725 = vpack.c.b16 %v1245, %v1241
        %v1726 = vpack.c.b16 %v1246, %v1242
        %v1727 = vpack.c.b16 %v1251, %v1247
        %v1728 = vpack.c.b16 %v1252, %v1248
        %v1729 = vpack.c.b16 %v1253, %v1249
        %v1730 = vpack.c.b16 %v1254, %v1250
        %v1731 = vpack.c.b16 %v1259, %v1255
        %v1732 = vpack.c.b16 %v1260, %v1256
        %v1733 = vpack.c.b16 %v1261, %v1257
        %v1734 = vpack.c.b16 %v1262, %v1258
        %v1735 = vpack.c.b16 %v1267, %v1263
        %v1736 = vpack.c.b16 %v1268, %v1264
        %v1737 = vpack.c.b16 %v1269, %v1265
        %v1738 = vpack.c.b16 %v1270, %v1266
        %v1739 = vpack.c.b16 %v1275, %v1271
        %v1740 = vpack.c.b16 %v1276, %v1272
        %v1741 = vpack.c.b16 %v1277, %v1273
        %v1742 = vpack.c.b16 %v1278, %v1274
        %v1743 = vpack.c.b16 %v1283, %v1279
        %v1744 = vpack.c.b16 %v1284, %v1280
        %v1745 = vpack.c.b16 %v1285, %v1281
        %v1746 = vpack.c.b16 %v1286, %v1282
        %v1747 = vpack.c.b16 %v1291, %v1287
        %v1748 = vpack.c.b16 %v1292, %v1288
        %v1749 = vpack.c.b16 %v1293, %v1289
        %v1750 = vpack.c.b16 %v1294, %v1290
        %v1751 = vpack.c.b16 %v1299, %v1295
        %v1752 = vpack.c.b16 %v1300, %v1296
        %v1753 = vpack.c.b16 %v1301, %v1297
        %v1754 = vpack.c.b16 %v1302, %v1298
        %v1755 = vpack.c.b16 %v1307, %v1303
        %v1756 = vpack.c.b16 %v1308, %v1304
        %v1757 = vpack.c.b16 %v1309, %v1305
        %v1758 = vpack.c.b16 %v1310, %v1306
        %v1759 = vpack.c.b16 %v1315, %v1311
        %v1760 = vpack.c.b16 %v1316, %v1312
        %v1761 = vpack.c.b16 %v1317, %v1313
        %v1762 = vpack.c.b16 %v1318, %v1314
        %v1763 = vpack.c.b16 %v1323, %v1319
        %v1764 = vpack.c.b16 %v1324, %v1320
        %v1765 = vpack.c.b16 %v1325, %v1321
        %v1766 = vpack.c.b16 %v1326, %v1322
        %v1767 = vpack.c.b16 %v1331, %v1327
        %v1768 = vpack.c.b16 %v1332, %v1328
        %v1769 = vpack.c.b16 %v1333, %v1329
        %v1770 = vpack.c.b16 %v1334, %v1330
        %v1771 = vpack.c.b16 %v1339, %v1335
        %v1772 = vpack.c.b16 %v1340, %v1336
        %v1773 = vpack.c.b16 %v1341, %v1337
        %v1774 = vpack.c.b16 %v1342, %v1338
        %v1775 = vpack.c.b16 %v1347, %v1343
        %v1776 = vpack.c.b16 %v1348, %v1344
        %v1777 = vpack.c.b16 %v1349, %v1345
        %v1778 = vpack.c.b16 %v1350, %v1346
        %v1779 = vpack.c.b16 %v1355, %v1351
        %v1780 = vpack.c.b16 %v1356, %v1352
        %v1781 = vpack.c.b16 %v1357, %v1353
        %v1782 = vpack.c.b16 %v1358, %v1354
        %v1783 = vpack.c.b16 %v1363, %v1359
        %v1784 = vpack.c.b16 %v1364, %v1360
        %v1785 = vpack.c.b16 %v1365, %v1361
        %v1786 = vpack.c.b16 %v1366, %v1362
        %v1787 = vpack.c.b16 %v1371, %v1367
        %v1788 = vpack.c.b16 %v1372, %v1368
        %v1789 = vpack.c.b16 %v1373, %v1369
        %v1790 = vpack.c.b16 %v1374, %v1370
        %v1791 = vpack.c.b16 %v1379, %v1375
        %v1792 = vpack.c.b16 %v1380, %v1376
        %v1793 = vpack.c.b16 %v1381, %v1377
        %v1794 = vpack.c.b16 %v1382, %v1378
        %v1795 = vpack.c.b16 %v1387, %v1383
        %v1796 = vpack.c.b16 %v1388, %v1384
        %v1797 = vpack.c.b16 %v1389, %v1385
        %v1798 = vpack.c.b16 %v1390, %v1386
        %v1799 = vpack.c.b16 %v1395, %v1391
        %v1800 = vpack.c.b16 %v1396, %v1392
        %v1801 = vpack.c.b16 %v1397, %v1393
        %v1802 = vpack.c.b16 %v1398, %v1394
        %v1803 = vpack.c.b16 %v1403, %v1399
        %v1804 = vpack.c.b16 %v1404, %v1400
        %v1805 = vpack.c.b16 %v1405, %v1401
        %v1806 = vpack.c.b16 %v1406, %v1402
        %v1807 = vpack.c.b16 %v1411, %v1407
        %v1808 = vpack.c.b16 %v1412, %v1408
        %v1809 = vpack.c.b16 %v1413, %v1409
        %v1810 = vpack.c.b16 %v1414, %v1410
        %v1811 = vpack.c.b16 %v1419, %v1415
        %v1812 = vpack.c.b16 %v1420, %v1416
        %v1813 = vpack.c.b16 %v1421, %v1417
        %v1814 = vpack.c.b16 %v1422, %v1418
        %v1815 = vpack.c.b16 %v1427, %v1423
        %v1816 = vpack.c.b16 %v1428, %v1424
        %v1817 = vpack.c.b16 %v1429, %v1425
        %v1818 = vpack.c.b16 %v1430, %v1426
        %v1819 = vpack.c.b16 %v1435, %v1431
        %v1820 = vpack.c.b16 %v1436, %v1432
        %v1821 = vpack.c.b16 %v1437, %v1433
        %v1822 = vpack.c.b16 %v1438, %v1434
        %v1823 = vpack.c.b16 %v1443, %v1439
        %v1824 = vpack.c.b16 %v1444, %v1440
        %v1825 = vpack.c.b16 %v1445, %v1441
        %v1826 = vpack.c.b16 %v1446, %v1442
        %v1827 = vpack.c.b16 %v1451, %v1447
        %v1828 = vpack.c.b16 %v1452, %v1448
        %v1829 = vpack.c.b16 %v1453, %v1449
        %v1830 = vpack.c.b16 %v1454, %v1450
        %v1831 = vpack.c.b16 %v1459, %v1455
        %v1832 = vpack.c.b16 %v1460, %v1456
        %v1833 = vpack.c.b16 %v1461, %v1457
        %v1834 = vpack.c.b16 %v1462, %v1458
        %v1835 = vpack.c.b16 %v1467, %v1463
        %v1836 = vpack.c.b16 %v1468, %v1464
        %v1837 = vpack.c.b16 %v1469, %v1465
        %v1838 = vpack.c.b16 %v1470, %v1466
        %v1839 = vpack.c.b16 %v1475, %v1471
        %v1840 = vpack.c.b16 %v1476, %v1472
        %v1841 = vpack.c.b16 %v1477, %v1473
        %v1842 = vpack.c.b16 %v1478, %v1474
        %v1843 = vpack.c.b16 %v1483, %v1479
        %v1844 = vpack.c.b16 %v1484, %v1480
        %v1845 = vpack.c.b16 %v1485, %v1481
        %v1846 = vpack.c.b16 %v1486, %v1482
        %v1847 = vpack.c.b16 %v1491, %v1487
        %v1848 = vpack.c.b16 %v1492, %v1488
        %v1849 = vpack.c.b16 %v1493, %v1489
        %v1850 = vpack.c.b16 %v1494, %v1490
        %v1851 = vpack.c.b16 %v1499, %v1495
        %v1852 = vpack.c.b16 %v1500, %v1496
        %v1853 = vpack.c.b16 %v1501, %v1497
        %v1854 = vpack.c.b16 %v1502, %v1498
        %v1855 = vpack.c.b16 %v1507, %v1503
        %v1856 = vpack.c.b16 %v1508, %v1504
        %v1857 = vpack.c.b16 %v1509, %v1505
        %v1858 = vpack.c.b16 %v1510, %v1506
        %v1859 = vpack.c.b16 %v1515, %v1511
        %v1860 = vpack.c.b16 %v1516, %v1512
        %v1861 = vpack.c.b16 %v1517, %v1513
        %v1862 = vpack.c.b16 %v1518, %v1514
        %v1863 = vpack.c.b16 %v1523, %v1519
        %v1864 = vpack.c.b16 %v1524, %v1520
        %v1865 = vpack.c.b16 %v1525, %v1521
        %v1866 = vpack.c.b16 %v1526, %v1522
        %v1867 = vpack.c.b16 %v1531, %v1527
        %v1868 = vpack.c.b16 %v1532, %v1528
        %v1869 = vpack.c.b16 %v1533, %v1529
        %v1870 = vpack.c.b16 %v1534, %v1530
        %v1871 = vpack.c.b16 %v1539, %v1535
        %v1872 = vpack.c.b16 %v1540, %v1536
        %v1873 = vpack.c.b16 %v1541, %v1537
        %v1874 = vpack.c.b16 %v1542, %v1538
        %v1875 = vpack.c.b16 %v1547, %v1543
        %v1876 = vpack.c.b16 %v1548, %v1544
        %v1877 = vpack.c.b16 %v1549, %v1545
        %v1878 = vpack.c.b16 %v1550, %v1546
        %v1879 = vpack.c.b16 %v1555, %v1551
        %v1880 = vpack.c.b16 %v1556, %v1552
        %v1881 = vpack.c.b16 %v1557, %v1553
        %v1882 = vpack.c.b16 %v1558, %v1554
        %v1883 = vpack.c.b16 %v1563, %v1559
        %v1884 = vpack.c.b16 %v1564, %v1560
        %v1885 = vpack.c.b16 %v1565, %v1561
        %v1886 = vpack.c.b16 %v1566, %v1562
        %v1887 = vpack.c.b16 %v1571, %v1567
        %v1888 = vpack.c.b16 %v1572, %v1568
        %v1889 = vpack.c.b16 %v1573, %v1569
        %v1890 = vpack.c.b16 %v1574, %v1570
        %v1891 = vpack.c.b16 %v1579, %v1575
        %v1892 = vpack.c.b16 %v1580, %v1576
        %v1893 = vpack.c.b16 %v1581, %v1577
        %v1894 = vpack.c.b16 %v1582, %v1578
        %v1895 = vpack.c.b16 %v1587, %v1583
        %v1896 = vpack.c.b16 %v1588, %v1584
        %v1897 = vpack.c.b16 %v1589, %v1585
        %v1898 = vpack.c.b16 %v1590, %v1586
        %v1899 = vpack.c.b16 %v1595, %v1591
        %v1900 = vpack.c.b16 %v1596, %v1592
        %v1901 = vpack.c.b16 %v1597, %v1593
        %v1902 = vpack.c.b16 %v1598, %v1594
        %v1903 = vpack.c.b16 %v1603, %v1599
        %v1904 = vpack.c.b16 %v1604, %v1600
        %v1905 = vpack.c.b16 %v1605, %v1601
        %v1906 = vpack.c.b16 %v1606, %v1602
        %v1907 = vpack.c.b16 %v1611, %v1607
        %v1908 = vpack.c.b16 %v1612, %v1608
        %v1909 = vpack.c.b16 %v1613, %v1609
        %v1910 = vpack.c.b16 %v1614, %v1610
        %v1911 = vpack.c.b16 %v1619, %v1615
        %v1912 = vpack.c.b16 %v1620, %v1616
        %v1913 = vpack.c.b16 %v1621, %v1617
        %v1914 = vpack.c.b16 %v1622, %v1618
        %v1915 = vpack.c.b16 %v1627, %v1623
        %v1916 = vpack.c.b16 %v1628, %v1624
        %v1917 = vpack.c.b16 %v1629, %v1625
        %v1918 = vpack.c.b16 %v1630, %v1626
        %v1919 = vpack.c.b16 %v1635, %v1631
        %v1920 = vpack.c.b16 %v1636, %v1632
        %v1921 = vpack.c.b16 %v1637, %v1633
        %v1922 = vpack.c.b16 %v1638, %v1634
        %v1923 = vpack.c.b16 %v1643, %v1639
        %v1924 = vpack.c.b16 %v1644, %v1640
        %v1925 = vpack.c.b16 %v1645, %v1641
        %v1926 = vpack.c.b16 %v1646, %v1642
        %v1927 = vpack.c.b16 %v1651, %v1647
        %v1928 = vpack.c.b16 %v1652, %v1648
        %v1929 = vpack.c.b16 %v1653, %v1649
        %v1930 = vpack.c.b16 %v1654, %v1650
        %v1931 = vpack.c.b16 %v1659, %v1655
        %v1932 = vpack.c.b16 %v1660, %v1656
        %v1933 = vpack.c.b16 %v1661, %v1657
        %v1934 = vpack.c.b16 %v1662, %v1658
        %v1935 = vpack.c.b16 %v1667, %v1663
        %v1936 = vpack.c.b16 %v1668, %v1664
        %v1937 = vpack.c.b16 %v1669, %v1665
        %v1938 = vpack.c.b16 %v1670, %v1666
        %v1939 = vpack.c.b16 %v1675, %v1671
        %v1940 = vpack.c.b16 %v1676, %v1672
        %v1941 = vpack.c.b16 %v1677, %v1673
        %v1942 = vpack.c.b16 %v1678, %v1674
        %v1943 = vpack.c.b16 %v1683, %v1679
        %v1944 = vpack.c.b16 %v1684, %v1680
        %v1945 = vpack.c.b16 %v1685, %v1681
        %v1946 = vpack.c.b16 %v1686, %v1682
        %v1947 = vpack.c.b16 %v1691, %v1687
        %v1948 = vpack.c.b16 %v1692, %v1688
        %v1949 = vpack.c.b16 %v1693, %v1689
        %v1950 = vpack.c.b16 %v1694, %v1690
        %2207 = vmatprep.subr.bf16.mxu0 %v1696
        %2208 = vmatpush1.bf16.msra.mxu0 %v1695
        %2209 = vmatprep.subr.bf16.mxu0 %v1700
        %2210 = vmatpush1.bf16.msra.mxu0 %v1699
        %2211 = vmatprep.subr.bf16.mxu0 %v1704
        %2212 = vmatpush1.bf16.msra.mxu0 %v1703
        %2213 = vmatprep.subr.bf16.mxu0 %v1708
        %2214 = vmatpush1.bf16.msra.mxu0 %v1707
        %2215 = vmatprep.subr.bf16.mxu0 %v1712
        %2216 = vmatpush1.bf16.msra.mxu0 %v1711
        %2217 = vmatprep.subr.bf16.mxu0 %v1716
        %2218 = vmatpush1.bf16.msra.mxu0 %v1715
        %2219 = vmatprep.subr.bf16.mxu0 %v1720
        %2220 = vmatpush1.bf16.msra.mxu0 %v1719
        %2221 = vmatprep.subr.bf16.mxu0 %v1724
        %2222 = vmatpush1.bf16.msra.mxu0 %v1723
        %2223 = vmatprep.subr.bf16.mxu0 %v1728
        %2224 = vmatpush1.bf16.msra.mxu0 %v1727
        %2225 = vmatprep.subr.bf16.mxu0 %v1732
        %2226 = vmatpush1.bf16.msra.mxu0 %v1731
        %2227 = vmatprep.subr.bf16.mxu0 %v1736
        %2228 = vmatpush1.bf16.msra.mxu0 %v1735
        %2229 = vmatprep.subr.bf16.mxu0 %v1740
        %2230 = vmatpush1.bf16.msra.mxu0 %v1739
        %2231 = vmatprep.subr.bf16.mxu0 %v1744
        %2232 = vmatpush1.bf16.msra.mxu0 %v1743
        %2233 = vmatprep.subr.bf16.mxu0 %v1748
        %2234 = vmatpush1.bf16.msra.mxu0 %v1747
        %2235 = vmatprep.subr.bf16.mxu0 %v1752
        %2236 = vmatpush1.bf16.msra.mxu0 %v1751
        %2237 = vmatprep.subr.bf16.mxu0 %v1756
        %2238 = vmatpush1.bf16.msra.mxu0 %v1755
        %2239 = vmatprep.mubr.bf16.mxu0 %v864
        %2240 = vmatmul.mubr.bf16.gmra.mrb[0].mxu0 %v863
        %v2241 = vpop.f32.mrb[0].mxu0
        %v2242 = vadd.f32 0.0, %v2241
        %v2243 = vpop.f32.mrb[0].mxu0
        %v2244 = vadd.f32 0.0, %v2243
        %v2245 = vpop.f32.mrb[0].mxu0
        %v2246 = vadd.f32 0.0, %v2245
        %v2247 = vpop.f32.mrb[0].mxu0
        %v2248 = vadd.f32 0.0, %v2247
        %2249 = vmatprep.mubr.bf16.mxu0 %v872
        %2250 = vmatmul.mubr.bf16.gmra.mrb[0].mxu0 %v871
        %v2251 = vpop.f32.mrb[0].mxu0
        %v2252 = vadd.f32 0.0, %v2251
        %v2253 = vpop.f32.mrb[0].mxu0
        %v2254 = vadd.f32 0.0, %v2253
        %v2255 = vpop.f32.mrb[0].mxu0
        %v2256 = vadd.f32 0.0, %v2255
        %v2257 = vpop.f32.mrb[0].mxu0
        %v2258 = vadd.f32 0.0, %v2257
        %2259 = vmatprep.mubr.bf16.mxu0 %v880
        %2260 = vmatmul.mubr.bf16.gmra.mrb[0].mxu0 %v879
        %v2261 = vpop.f32.mrb[0].mxu0
        %v2262 = vadd.f32 0.0, %v2261
        %v2263 = vpop.f32.mrb[0].mxu0
        %v2264 = vadd.f32 0.0, %v2263
        %v2265 = vpop.f32.mrb[0].mxu0
        %v2266 = vadd.f32 0.0, %v2265
        %v2267 = vpop.f32.mrb[0].mxu0
        %v2268 = vadd.f32 0.0, %v2267
        %2269 = vmatprep.mubr.bf16.mxu0 %v888
        %2270 = vmatmul.mubr.bf16.gmra.mrb[0].mxu0 %v887
        %v2271 = vpop.f32.mrb[0].mxu0
        %v2272 = vadd.f32 0.0, %v2271
        %v2273 = vpop.f32.mrb[0].mxu0
        %v2274 = vadd.f32 0.0, %v2273
        %v2275 = vpop.f32.mrb[0].mxu0
        %v2276 = vadd.f32 0.0, %v2275
        %v2277 = vpop.f32.mrb[0].mxu0
        %v2278 = vadd.f32 0.0, %v2277
        %2279 = vdwg.mxu0
        %2280 = vmatprep.subr.bf16.mxu0 %v1760
        %2281 = vmatpush1.bf16.msra.mxu0 %v1759
        %2282 = vmatprep.subr.bf16.mxu0 %v1764
        %2283 = vmatpush1.bf16.msra.mxu0 %v1763
        %2284 = vmatprep.subr.bf16.mxu0 %v1768
        %2285 = vmatpush1.bf16.msra.mxu0 %v1767
        %2286 = vmatprep.subr.bf16.mxu0 %v1772
        %2287 = vmatpush1.bf16.msra.mxu0 %v1771
        %2288 = vmatprep.subr.bf16.mxu0 %v1776
        %2289 = vmatpush1.bf16.msra.mxu0 %v1775
        %2290 = vmatprep.subr.bf16.mxu0 %v1780
        %2291 = vmatpush1.bf16.msra.mxu0 %v1779
        %2292 = vmatprep.subr.bf16.mxu0 %v1784
        %2293 = vmatpush1.bf16.msra.mxu0 %v1783
        %2294 = vmatprep.subr.bf16.mxu0 %v1788
        %2295 = vmatpush1.bf16.msra.mxu0 %v1787
        %2296 = vmatprep.subr.bf16.mxu0 %v1792
        %2297 = vmatpush1.bf16.msra.mxu0 %v1791
        %2298 = vmatprep.subr.bf16.mxu0 %v1796
        %2299 = vmatpush1.bf16.msra.mxu0 %v1795
        %2300 = vmatprep.subr.bf16.mxu0 %v1800
        %2301 = vmatpush1.bf16.msra.mxu0 %v1799
        %2302 = vmatprep.subr.bf16.mxu0 %v1804
        %2303 = vmatpush1.bf16.msra.mxu0 %v1803
        %2304 = vmatprep.subr.bf16.mxu0 %v1808
        %2305 = vmatpush1.bf16.msra.mxu0 %v1807
        %2306 = vmatprep.subr.bf16.mxu0 %v1812
        %2307 = vmatpush1.bf16.msra.mxu0 %v1811
        %2308 = vmatprep.subr.bf16.mxu0 %v1816
        %2309 = vmatpush1.bf16.msra.mxu0 %v1815
        %2310 = vmatprep.subr.bf16.mxu0 %v1820
        %2311 = vmatpush1.bf16.msra.mxu0 %v1819
        %2312 = vmatprep.mubr.bf16.mxu0 %v866
        %2313 = vmatmul.mubr.bf16.gmra.mrb[0].mxu0 %v865
        %v2314 = vpop.f32.mrb[0].mxu0
        %v2315 = vadd.f32 %v2242, %v2314
        %v2316 = vpop.f32.mrb[0].mxu0
        %v2317 = vadd.f32 %v2244, %v2316
        %v2318 = vpop.f32.mrb[0].mxu0
        %v2319 = vadd.f32 %v2246, %v2318
        %v2320 = vpop.f32.mrb[0].mxu0
        %v2321 = vadd.f32 %v2248, %v2320
        %2322 = vmatprep.mubr.bf16.mxu0 %v874
        %2323 = vmatmul.mubr.bf16.gmra.mrb[0].mxu0 %v873
        %v2324 = vpop.f32.mrb[0].mxu0
        %v2325 = vadd.f32 %v2252, %v2324
        %v2326 = vpop.f32.mrb[0].mxu0
        %v2327 = vadd.f32 %v2254, %v2326
        %v2328 = vpop.f32.mrb[0].mxu0
        %v2329 = vadd.f32 %v2256, %v2328
        %v2330 = vpop.f32.mrb[0].mxu0
        %v2331 = vadd.f32 %v2258, %v2330
        %2332 = vmatprep.mubr.bf16.mxu0 %v882
        %2333 = vmatmul.mubr.bf16.gmra.mrb[0].mxu0 %v881
        %v2334 = vpop.f32.mrb[0].mxu0
        %v2335 = vadd.f32 %v2262, %v2334
        %v2336 = vpop.f32.mrb[0].mxu0
        %v2337 = vadd.f32 %v2264, %v2336
        %v2338 = vpop.f32.mrb[0].mxu0
        %v2339 = vadd.f32 %v2266, %v2338
        %v2340 = vpop.f32.mrb[0].mxu0
        %v2341 = vadd.f32 %v2268, %v2340
        %2342 = vmatprep.mubr.bf16.mxu0 %v890
        %2343 = vmatmul.mubr.bf16.gmra.mrb[0].mxu0 %v889
        %v2344 = vpop.f32.mrb[0].mxu0
        %v2345 = vadd.f32 %v2272, %v2344
        %v2346 = vpop.f32.mrb[0].mxu0
        %v2347 = vadd.f32 %v2274, %v2346
        %v2348 = vpop.f32.mrb[0].mxu0
        %v2349 = vadd.f32 %v2276, %v2348
        %v2350 = vpop.f32.mrb[0].mxu0
        %v2351 = vadd.f32 %v2278, %v2350
        %2352 = vdwg.mxu0
        %2353 = vmatprep.subr.bf16.mxu0 %v1824
        %2354 = vmatpush1.bf16.msra.mxu0 %v1823
        %2355 = vmatprep.subr.bf16.mxu0 %v1828
        %2356 = vmatpush1.bf16.msra.mxu0 %v1827
        %2357 = vmatprep.subr.bf16.mxu0 %v1832
        %2358 = vmatpush1.bf16.msra.mxu0 %v1831
        %2359 = vmatprep.subr.bf16.mxu0 %v1836
        %2360 = vmatpush1.bf16.msra.mxu0 %v1835
        %2361 = vmatprep.subr.bf16.mxu0 %v1840
        %2362 = vmatpush1.bf16.msra.mxu0 %v1839
        %2363 = vmatprep.subr.bf16.mxu0 %v1844
        %2364 = vmatpush1.bf16.msra.mxu0 %v1843
        %2365 = vmatprep.subr.bf16.mxu0 %v1848
        %2366 = vmatpush1.bf16.msra.mxu0 %v1847
        %2367 = vmatprep.subr.bf16.mxu0 %v1852
        %2368 = vmatpush1.bf16.msra.mxu0 %v1851
        %2369 = vmatprep.subr.bf16.mxu0 %v1856
        %2370 = vmatpush1.bf16.msra.mxu0 %v1855
        %2371 = vmatprep.subr.bf16.mxu0 %v1860
        %2372 = vmatpush1.bf16.msra.mxu0 %v1859
        %2373 = vmatprep.subr.bf16.mxu0 %v1864
        %2374 = vmatpush1.bf16.msra.mxu0 %v1863
        %2375 = vmatprep.subr.bf16.mxu0 %v1868
        %2376 = vmatpush1.bf16.msra.mxu0 %v1867
        %2377 = vmatprep.subr.bf16.mxu0 %v1872
        %2378 = vmatpush1.bf16.msra.mxu0 %v1871
        %2379 = vmatprep.subr.bf16.mxu0 %v1876
        %2380 = vmatpush1.bf16.msra.mxu0 %v1875
        %2381 = vmatprep.subr.bf16.mxu0 %v1880
        %2382 = vmatpush1.bf16.msra.mxu0 %v1879
        %2383 = vmatprep.subr.bf16.mxu0 %v1884
        %2384 = vmatpush1.bf16.msra.mxu0 %v1883
        %2385 = vmatprep.mubr.bf16.mxu0 %v868
        %2386 = vmatmul.mubr.bf16.gmra.mrb[0].mxu0 %v867
        %v2387 = vpop.f32.mrb[0].mxu0
        %v2388 = vadd.f32 %v2315, %v2387
        %v2389 = vpop.f32.mrb[0].mxu0
        %v2390 = vadd.f32 %v2317, %v2389
        %v2391 = vpop.f32.mrb[0].mxu0
        %v2392 = vadd.f32 %v2319, %v2391
        %v2393 = vpop.f32.mrb[0].mxu0
        %v2394 = vadd.f32 %v2321, %v2393
        %2395 = vmatprep.mubr.bf16.mxu0 %v876
        %2396 = vmatmul.mubr.bf16.gmra.mrb[0].mxu0 %v875
        %v2397 = vpop.f32.mrb[0].mxu0
        %v2398 = vadd.f32 %v2325, %v2397
        %v2399 = vpop.f32.mrb[0].mxu0
        %v2400 = vadd.f32 %v2327, %v2399
        %v2401 = vpop.f32.mrb[0].mxu0
        %v2402 = vadd.f32 %v2329, %v2401
        %v2403 = vpop.f32.mrb[0].mxu0
        %v2404 = vadd.f32 %v2331, %v2403
        %2405 = vmatprep.mubr.bf16.mxu0 %v884
        %2406 = vmatmul.mubr.bf16.gmra.mrb[0].mxu0 %v883
        %v2407 = vpop.f32.mrb[0].mxu0
        %v2408 = vadd.f32 %v2335, %v2407
        %v2409 = vpop.f32.mrb[0].mxu0
        %v2410 = vadd.f32 %v2337, %v2409
        %v2411 = vpop.f32.mrb[0].mxu0
        %v2412 = vadd.f32 %v2339, %v2411
        %v2413 = vpop.f32.mrb[0].mxu0
        %v2414 = vadd.f32 %v2341, %v2413
        %2415 = vmatprep.mubr.bf16.mxu0 %v892
        %2416 = vmatmul.mubr.bf16.gmra.mrb[0].mxu0 %v891
        %v2417 = vpop.f32.mrb[0].mxu0
        %v2418 = vadd.f32 %v2345, %v2417
        %v2419 = vpop.f32.mrb[0].mxu0
        %v2420 = vadd.f32 %v2347, %v2419
        %v2421 = vpop.f32.mrb[0].mxu0
        %v2422 = vadd.f32 %v2349, %v2421
        %v2423 = vpop.f32.mrb[0].mxu0
        %v2424 = vadd.f32 %v2351, %v2423
        %2425 = vdwg.mxu0
        %2426 = vmatprep.subr.bf16.mxu0 %v1888
        %2427 = vmatpush1.bf16.msra.mxu0 %v1887
        %2428 = vmatprep.subr.bf16.mxu0 %v1892
        %2429 = vmatpush1.bf16.msra.mxu0 %v1891
        %2430 = vmatprep.subr.bf16.mxu0 %v1896
        %2431 = vmatpush1.bf16.msra.mxu0 %v1895
        %2432 = vmatprep.subr.bf16.mxu0 %v1900
        %2433 = vmatpush1.bf16.msra.mxu0 %v1899
        %2434 = vmatprep.subr.bf16.mxu0 %v1904
        %2435 = vmatpush1.bf16.msra.mxu0 %v1903
        %2436 = vmatprep.subr.bf16.mxu0 %v1908
        %2437 = vmatpush1.bf16.msra.mxu0 %v1907
        %2438 = vmatprep.subr.bf16.mxu0 %v1912
        %2439 = vmatpush1.bf16.msra.mxu0 %v1911
        %2440 = vmatprep.subr.bf16.mxu0 %v1916
        %2441 = vmatpush1.bf16.msra.mxu0 %v1915
        %2442 = vmatprep.subr.bf16.mxu0 %v1920
        %2443 = vmatpush1.bf16.msra.mxu0 %v1919
        %2444 = vmatprep.subr.bf16.mxu0 %v1924
        %2445 = vmatpush1.bf16.msra.mxu0 %v1923
        %2446 = vmatprep.subr.bf16.mxu0 %v1928
        %2447 = vmatpush1.bf16.msra.mxu0 %v1927
        %2448 = vmatprep.subr.bf16.mxu0 %v1932
        %2449 = vmatpush1.bf16.msra.mxu0 %v1931
        %2450 = vmatprep.subr.bf16.mxu0 %v1936
        %2451 = vmatpush1.bf16.msra.mxu0 %v1935
        %2452 = vmatprep.subr.bf16.mxu0 %v1940
        %2453 = vmatpush1.bf16.msra.mxu0 %v1939
        %2454 = vmatprep.subr.bf16.mxu0 %v1944
        %2455 = vmatpush1.bf16.msra.mxu0 %v1943
        %2456 = vmatprep.subr.bf16.mxu0 %v1948
        %2457 = vmatpush1.bf16.msra.mxu0 %v1947
        %2458 = vmatprep.mubr.bf16.mxu0 %v870
        %2459 = vmatmul.mubr.bf16.gmra.mrb[0].mxu0 %v869
        %v2460 = vpop.f32.mrb[0].mxu0
        %v2461 = vadd.f32 %v2388, %v2460
        %v2462 = vpop.f32.mrb[0].mxu0
        %v2463 = vadd.f32 %v2390, %v2462
        %v2464 = vpop.f32.mrb[0].mxu0
        %v2465 = vadd.f32 %v2392, %v2464
        %v2466 = vpop.f32.mrb[0].mxu0
        %v2467 = vadd.f32 %v2394, %v2466
        %2468 = vmatprep.mubr.bf16.mxu0 %v878
        %2469 = vmatmul.mubr.bf16.gmra.mrb[0].mxu0 %v877
        %v2470 = vpop.f32.mrb[0].mxu0
        %v2471 = vadd.f32 %v2398, %v2470
        %v2472 = vpop.f32.mrb[0].mxu0
        %v2473 = vadd.f32 %v2400, %v2472
        %v2474 = vpop.f32.mrb[0].mxu0
        %v2475 = vadd.f32 %v2402, %v2474
        %v2476 = vpop.f32.mrb[0].mxu0
        %v2477 = vadd.f32 %v2404, %v2476
        %2478 = vmatprep.mubr.bf16.mxu0 %v886
        %2479 = vmatmul.mubr.bf16.gmra.mrb[0].mxu0 %v885
        %v2480 = vpop.f32.mrb[0].mxu0
        %v2481 = vadd.f32 %v2408, %v2480
        %v2482 = vpop.f32.mrb[0].mxu0
        %v2483 = vadd.f32 %v2410, %v2482
        %v2484 = vpop.f32.mrb[0].mxu0
        %v2485 = vadd.f32 %v2412, %v2484
        %v2486 = vpop.f32.mrb[0].mxu0
        %v2487 = vadd.f32 %v2414, %v2486
        %2488 = vmatprep.mubr.bf16.mxu0 %v894
        %2489 = vmatmul.mubr.bf16.gmra.mrb[0].mxu0 %v893
        %v2490 = vpop.f32.mrb[0].mxu0
        %v2491 = vadd.f32 %v2418, %v2490
        %v2492 = vpop.f32.mrb[0].mxu0
        %v2493 = vadd.f32 %v2420, %v2492
        %v2494 = vpop.f32.mrb[0].mxu0
        %v2495 = vadd.f32 %v2422, %v2494
        %v2496 = vpop.f32.mrb[0].mxu0
        %v2497 = vadd.f32 %v2424, %v2496
        %2498 = vdwg.mxu0
        %2499 = vmatprep.subr.bf16.mxu0 %v1698
        %2500 = vmatpush1.bf16.msra.mxu0 %v1697
        %2501 = vmatprep.subr.bf16.mxu0 %v1702
        %2502 = vmatpush1.bf16.msra.mxu0 %v1701
        %2503 = vmatprep.subr.bf16.mxu0 %v1706
        %2504 = vmatpush1.bf16.msra.mxu0 %v1705
        %2505 = vmatprep.subr.bf16.mxu0 %v1710
        %2506 = vmatpush1.bf16.msra.mxu0 %v1709
        %2507 = vmatprep.subr.bf16.mxu0 %v1714
        %2508 = vmatpush1.bf16.msra.mxu0 %v1713
        %2509 = vmatprep.subr.bf16.mxu0 %v1718
        %2510 = vmatpush1.bf16.msra.mxu0 %v1717
        %2511 = vmatprep.subr.bf16.mxu0 %v1722
        %2512 = vmatpush1.bf16.msra.mxu0 %v1721
        %2513 = vmatprep.subr.bf16.mxu0 %v1726
        %2514 = vmatpush1.bf16.msra.mxu0 %v1725
        %2515 = vmatprep.subr.bf16.mxu0 %v1730
        %2516 = vmatpush1.bf16.msra.mxu0 %v1729
        %2517 = vmatprep.subr.bf16.mxu0 %v1734
        %2518 = vmatpush1.bf16.msra.mxu0 %v1733
        %2519 = vmatprep.subr.bf16.mxu0 %v1738
        %2520 = vmatpush1.bf16.msra.mxu0 %v1737
        %2521 = vmatprep.subr.bf16.mxu0 %v1742
        %2522 = vmatpush1.bf16.msra.mxu0 %v1741
        %2523 = vmatprep.subr.bf16.mxu0 %v1746
        %2524 = vmatpush1.bf16.msra.mxu0 %v1745
        %2525 = vmatprep.subr.bf16.mxu0 %v1750
        %2526 = vmatpush1.bf16.msra.mxu0 %v1749
        %2527 = vmatprep.subr.bf16.mxu0 %v1754
        %2528 = vmatpush1.bf16.msra.mxu0 %v1753
        %2529 = vmatprep.subr.bf16.mxu0 %v1758
        %2530 = vmatpush1.bf16.msra.mxu0 %v1757
        %2531 = vmatprep.mubr.bf16.mxu0 %v864
        %2532 = vmatmul.mubr.bf16.gmra.mrb[0].mxu0 %v863
        %v2533 = vpop.f32.mrb[0].mxu0
        %v2534 = vadd.f32 0.0, %v2533
        %v2535 = vpop.f32.mrb[0].mxu0
        %v2536 = vadd.f32 0.0, %v2535
        %v2537 = vpop.f32.mrb[0].mxu0
        %v2538 = vadd.f32 0.0, %v2537
        %v2539 = vpop.f32.mrb[0].mxu0
        %v2540 = vadd.f32 0.0, %v2539
        %2541 = vmatprep.mubr.bf16.mxu0 %v872
        %2542 = vmatmul.mubr.bf16.gmra.mrb[0].mxu0 %v871
        %v2543 = vpop.f32.mrb[0].mxu0
        %v2544 = vadd.f32 0.0, %v2543
        %v2545 = vpop.f32.mrb[0].mxu0
        %v2546 = vadd.f32 0.0, %v2545
        %v2547 = vpop.f32.mrb[0].mxu0
        %v2548 = vadd.f32 0.0, %v2547
        %v2549 = vpop.f32.mrb[0].mxu0
        %v2550 = vadd.f32 0.0, %v2549
        %2551 = vmatprep.mubr.bf16.mxu0 %v880
        %2552 = vmatmul.mubr.bf16.gmra.mrb[0].mxu0 %v879
        %v2553 = vpop.f32.mrb[0].mxu0
        %v2554 = vadd.f32 0.0, %v2553
        %v2555 = vpop.f32.mrb[0].mxu0
        %v2556 = vadd.f32 0.0, %v2555
        %v2557 = vpop.f32.mrb[0].mxu0
        %v2558 = vadd.f32 0.0, %v2557
        %v2559 = vpop.f32.mrb[0].mxu0
        %v2560 = vadd.f32 0.0, %v2559
        %2561 = vmatprep.mubr.bf16.mxu0 %v888
        %2562 = vmatmul.mubr.bf16.gmra.mrb[0].mxu0 %v887
        %v2563 = vpop.f32.mrb[0].mxu0
        %v2564 = vadd.f32 0.0, %v2563
        %v2565 = vpop.f32.mrb[0].mxu0
        %v2566 = vadd.f32 0.0, %v2565
        %v2567 = vpop.f32.mrb[0].mxu0
        %v2568 = vadd.f32 0.0, %v2567
        %v2569 = vpop.f32.mrb[0].mxu0
        %v2570 = vadd.f32 0.0, %v2569
        %2571 = vdwg.mxu0
        %2572 = vmatprep.subr.bf16.mxu0 %v1762
        %2573 = vmatpush1.bf16.msra.mxu0 %v1761
        %2574 = vmatprep.subr.bf16.mxu0 %v1766
        %2575 = vmatpush1.bf16.msra.mxu0 %v1765
        %2576 = vmatprep.subr.bf16.mxu0 %v1770
        %2577 = vmatpush1.bf16.msra.mxu0 %v1769
        %2578 = vmatprep.subr.bf16.mxu0 %v1774
        %2579 = vmatpush1.bf16.msra.mxu0 %v1773
        %2580 = vmatprep.subr.bf16.mxu0 %v1778
        %2581 = vmatpush1.bf16.msra.mxu0 %v1777
        %2582 = vmatprep.subr.bf16.mxu0 %v1782
        %2583 = vmatpush1.bf16.msra.mxu0 %v1781
        %2584 = vmatprep.subr.bf16.mxu0 %v1786
        %2585 = vmatpush1.bf16.msra.mxu0 %v1785
        %2586 = vmatprep.subr.bf16.mxu0 %v1790
        %2587 = vmatpush1.bf16.msra.mxu0 %v1789
        %2588 = vmatprep.subr.bf16.mxu0 %v1794
        %2589 = vmatpush1.bf16.msra.mxu0 %v1793
        %2590 = vmatprep.subr.bf16.mxu0 %v1798
        %2591 = vmatpush1.bf16.msra.mxu0 %v1797
        %2592 = vmatprep.subr.bf16.mxu0 %v1802
        %2593 = vmatpush1.bf16.msra.mxu0 %v1801
        %2594 = vmatprep.subr.bf16.mxu0 %v1806
        %2595 = vmatpush1.bf16.msra.mxu0 %v1805
        %2596 = vmatprep.subr.bf16.mxu0 %v1810
        %2597 = vmatpush1.bf16.msra.mxu0 %v1809
        %2598 = vmatprep.subr.bf16.mxu0 %v1814
        %2599 = vmatpush1.bf16.msra.mxu0 %v1813
        %2600 = vmatprep.subr.bf16.mxu0 %v1818
        %2601 = vmatpush1.bf16.msra.mxu0 %v1817
        %2602 = vmatprep.subr.bf16.mxu0 %v1822
        %2603 = vmatpush1.bf16.msra.mxu0 %v1821
        %2604 = vmatprep.mubr.bf16.mxu0 %v866
        %2605 = vmatmul.mubr.bf16.gmra.mrb[0].mxu0 %v865
        %v2606 = vpop.f32.mrb[0].mxu0
        %v2607 = vadd.f32 %v2534, %v2606
        %v2608 = vpop.f32.mrb[0].mxu0
        %v2609 = vadd.f32 %v2536, %v2608
        %v2610 = vpop.f32.mrb[0].mxu0
        %v2611 = vadd.f32 %v2538, %v2610
        %v2612 = vpop.f32.mrb[0].mxu0
        %v2613 = vadd.f32 %v2540, %v2612
        %2614 = vmatprep.mubr.bf16.mxu0 %v874
        %2615 = vmatmul.mubr.bf16.gmra.mrb[0].mxu0 %v873
        %v2616 = vpop.f32.mrb[0].mxu0
        %v2617 = vadd.f32 %v2544, %v2616
        %v2618 = vpop.f32.mrb[0].mxu0
        %v2619 = vadd.f32 %v2546, %v2618
        %v2620 = vpop.f32.mrb[0].mxu0
        %v2621 = vadd.f32 %v2548, %v2620
        %v2622 = vpop.f32.mrb[0].mxu0
        %v2623 = vadd.f32 %v2550, %v2622
        %2624 = vmatprep.mubr.bf16.mxu0 %v882
        %2625 = vmatmul.mubr.bf16.gmra.mrb[0].mxu0 %v881
        %v2626 = vpop.f32.mrb[0].mxu0
        %v2627 = vadd.f32 %v2554, %v2626
        %v2628 = vpop.f32.mrb[0].mxu0
        %v2629 = vadd.f32 %v2556, %v2628
        %v2630 = vpop.f32.mrb[0].mxu0
        %v2631 = vadd.f32 %v2558, %v2630
        %v2632 = vpop.f32.mrb[0].mxu0
        %v2633 = vadd.f32 %v2560, %v2632
        %2634 = vmatprep.mubr.bf16.mxu0 %v890
        %2635 = vmatmul.mubr.bf16.gmra.mrb[0].mxu0 %v889
        %v2636 = vpop.f32.mrb[0].mxu0
        %v2637 = vadd.f32 %v2564, %v2636
        %v2638 = vpop.f32.mrb[0].mxu0
        %v2639 = vadd.f32 %v2566, %v2638
        %v2640 = vpop.f32.mrb[0].mxu0
        %v2641 = vadd.f32 %v2568, %v2640
        %v2642 = vpop.f32.mrb[0].mxu0
        %v2643 = vadd.f32 %v2570, %v2642
        %2644 = vdwg.mxu0
        %2645 = vmatprep.subr.bf16.mxu0 %v1826
        %2646 = vmatpush1.bf16.msra.mxu0 %v1825
        %2647 = vmatprep.subr.bf16.mxu0 %v1830
        %2648 = vmatpush1.bf16.msra.mxu0 %v1829
        %2649 = vmatprep.subr.bf16.mxu0 %v1834
        %2650 = vmatpush1.bf16.msra.mxu0 %v1833
        %2651 = vmatprep.subr.bf16.mxu0 %v1838
        %2652 = vmatpush1.bf16.msra.mxu0 %v1837
        %2653 = vmatprep.subr.bf16.mxu0 %v1842
        %2654 = vmatpush1.bf16.msra.mxu0 %v1841
        %2655 = vmatprep.subr.bf16.mxu0 %v1846
        %2656 = vmatpush1.bf16.msra.mxu0 %v1845
        %2657 = vmatprep.subr.bf16.mxu0 %v1850
        %2658 = vmatpush1.bf16.msra.mxu0 %v1849
        %2659 = vmatprep.subr.bf16.mxu0 %v1854
        %2660 = vmatpush1.bf16.msra.mxu0 %v1853
        %2661 = vmatprep.subr.bf16.mxu0 %v1858
        %2662 = vmatpush1.bf16.msra.mxu0 %v1857
        %2663 = vmatprep.subr.bf16.mxu0 %v1862
        %2664 = vmatpush1.bf16.msra.mxu0 %v1861
        %2665 = vmatprep.subr.bf16.mxu0 %v1866
        %2666 = vmatpush1.bf16.msra.mxu0 %v1865
        %2667 = vmatprep.subr.bf16.mxu0 %v1870
        %2668 = vmatpush1.bf16.msra.mxu0 %v1869
        %2669 = vmatprep.subr.bf16.mxu0 %v1874
        %2670 = vmatpush1.bf16.msra.mxu0 %v1873
        %2671 = vmatprep.subr.bf16.mxu0 %v1878
        %2672 = vmatpush1.bf16.msra.mxu0 %v1877
        %2673 = vmatprep.subr.bf16.mxu0 %v1882
        %2674 = vmatpush1.bf16.msra.mxu0 %v1881
        %2675 = vmatprep.subr.bf16.mxu0 %v1886
        %2676 = vmatpush1.bf16.msra.mxu0 %v1885
        %2677 = vmatprep.mubr.bf16.mxu0 %v868
        %2678 = vmatmul.mubr.bf16.gmra.mrb[0].mxu0 %v867
        %v2679 = vpop.f32.mrb[0].mxu0
        %v2680 = vadd.f32 %v2607, %v2679
        %v2681 = vpop.f32.mrb[0].mxu0
        %v2682 = vadd.f32 %v2609, %v2681
        %v2683 = vpop.f32.mrb[0].mxu0
        %v2684 = vadd.f32 %v2611, %v2683
        %v2685 = vpop.f32.mrb[0].mxu0
        %v2686 = vadd.f32 %v2613, %v2685
        %2687 = vmatprep.mubr.bf16.mxu0 %v876
        %2688 = vmatmul.mubr.bf16.gmra.mrb[0].mxu0 %v875
        %v2689 = vpop.f32.mrb[0].mxu0
        %v2690 = vadd.f32 %v2617, %v2689
        %v2691 = vpop.f32.mrb[0].mxu0
        %v2692 = vadd.f32 %v2619, %v2691
        %v2693 = vpop.f32.mrb[0].mxu0
        %v2694 = vadd.f32 %v2621, %v2693
        %v2695 = vpop.f32.mrb[0].mxu0
        %v2696 = vadd.f32 %v2623, %v2695
        %2697 = vmatprep.mubr.bf16.mxu0 %v884
        %2698 = vmatmul.mubr.bf16.gmra.mrb[0].mxu0 %v883
        %v2699 = vpop.f32.mrb[0].mxu0
        %v2700 = vadd.f32 %v2627, %v2699
        %v2701 = vpop.f32.mrb[0].mxu0
        %v2702 = vadd.f32 %v2629, %v2701
        %v2703 = vpop.f32.mrb[0].mxu0
        %v2704 = vadd.f32 %v2631, %v2703
        %v2705 = vpop.f32.mrb[0].mxu0
        %v2706 = vadd.f32 %v2633, %v2705
        %2707 = vmatprep.mubr.bf16.mxu0 %v892
        %2708 = vmatmul.mubr.bf16.gmra.mrb[0].mxu0 %v891
        %v2709 = vpop.f32.mrb[0].mxu0
        %v2710 = vadd.f32 %v2637, %v2709
        %v2711 = vpop.f32.mrb[0].mxu0
        %v2712 = vadd.f32 %v2639, %v2711
        %v2713 = vpop.f32.mrb[0].mxu0
        %v2714 = vadd.f32 %v2641, %v2713
        %v2715 = vpop.f32.mrb[0].mxu0
        %v2716 = vadd.f32 %v2643, %v2715
        %2717 = vdwg.mxu0
        %2718 = vmatprep.subr.bf16.mxu0 %v1890
        %2719 = vmatpush1.bf16.msra.mxu0 %v1889
        %2720 = vmatprep.subr.bf16.mxu0 %v1894
        %2721 = vmatpush1.bf16.msra.mxu0 %v1893
        %2722 = vmatprep.subr.bf16.mxu0 %v1898
        %2723 = vmatpush1.bf16.msra.mxu0 %v1897
        %2724 = vmatprep.subr.bf16.mxu0 %v1902
        %2725 = vmatpush1.bf16.msra.mxu0 %v1901
        %2726 = vmatprep.subr.bf16.mxu0 %v1906
        %2727 = vmatpush1.bf16.msra.mxu0 %v1905
        %2728 = vmatprep.subr.bf16.mxu0 %v1910
        %2729 = vmatpush1.bf16.msra.mxu0 %v1909
        %2730 = vmatprep.subr.bf16.mxu0 %v1914
        %2731 = vmatpush1.bf16.msra.mxu0 %v1913
        %2732 = vmatprep.subr.bf16.mxu0 %v1918
        %2733 = vmatpush1.bf16.msra.mxu0 %v1917
        %2734 = vmatprep.subr.bf16.mxu0 %v1922
        %2735 = vmatpush1.bf16.msra.mxu0 %v1921
        %2736 = vmatprep.subr.bf16.mxu0 %v1926
        %2737 = vmatpush1.bf16.msra.mxu0 %v1925
        %2738 = vmatprep.subr.bf16.mxu0 %v1930
        %2739 = vmatpush1.bf16.msra.mxu0 %v1929
        %2740 = vmatprep.subr.bf16.mxu0 %v1934
        %2741 = vmatpush1.bf16.msra.mxu0 %v1933
        %2742 = vmatprep.subr.bf16.mxu0 %v1938
        %2743 = vmatpush1.bf16.msra.mxu0 %v1937
        %2744 = vmatprep.subr.bf16.mxu0 %v1942
        %2745 = vmatpush1.bf16.msra.mxu0 %v1941
        %2746 = vmatprep.subr.bf16.mxu0 %v1946
        %2747 = vmatpush1.bf16.msra.mxu0 %v1945
        %2748 = vmatprep.subr.bf16.mxu0 %v1950
        %2749 = vmatpush1.bf16.msra.mxu0 %v1949
        %2750 = vmatprep.mubr.bf16.mxu0 %v870
        %2751 = vmatmul.mubr.bf16.gmra.mrb[0].mxu0 %v869
        %v2752 = vpop.f32.mrb[0].mxu0
        %v2753 = vadd.f32 %v2680, %v2752
        %v2754 = vpop.f32.mrb[0].mxu0
        %v2755 = vadd.f32 %v2682, %v2754
        %v2756 = vpop.f32.mrb[0].mxu0
        %v2757 = vadd.f32 %v2684, %v2756
        %v2758 = vpop.f32.mrb[0].mxu0
        %v2759 = vadd.f32 %v2686, %v2758
        %2760 = vmatprep.mubr.bf16.mxu0 %v878
        %2761 = vmatmul.mubr.bf16.gmra.mrb[0].mxu0 %v877
        %v2762 = vpop.f32.mrb[0].mxu0
        %v2763 = vadd.f32 %v2690, %v2762
        %v2764 = vpop.f32.mrb[0].mxu0
        %v2765 = vadd.f32 %v2692, %v2764
        %v2766 = vpop.f32.mrb[0].mxu0
        %v2767 = vadd.f32 %v2694, %v2766
        %v2768 = vpop.f32.mrb[0].mxu0
        %v2769 = vadd.f32 %v2696, %v2768
        %2770 = vmatprep.mubr.bf16.mxu0 %v886
        %2771 = vmatmul.mubr.bf16.gmra.mrb[0].mxu0 %v885
        %v2772 = vpop.f32.mrb[0].mxu0
        %v2773 = vadd.f32 %v2700, %v2772
        %v2774 = vpop.f32.mrb[0].mxu0
        %v2775 = vadd.f32 %v2702, %v2774
        %v2776 = vpop.f32.mrb[0].mxu0
        %v2777 = vadd.f32 %v2704, %v2776
        %v2778 = vpop.f32.mrb[0].mxu0
        %v2779 = vadd.f32 %v2706, %v2778
        %2780 = vmatprep.mubr.bf16.mxu0 %v894
        %2781 = vmatmul.mubr.bf16.gmra.mrb[0].mxu0 %v893
        %v2782 = vpop.f32.mrb[0].mxu0
        %v2783 = vadd.f32 %v2710, %v2782
        %v2784 = vpop.f32.mrb[0].mxu0
        %v2785 = vadd.f32 %v2712, %v2784
        %v2786 = vpop.f32.mrb[0].mxu0
        %v2787 = vadd.f32 %v2714, %v2786
        %v2788 = vpop.f32.mrb[0].mxu0
        %v2789 = vadd.f32 %v2716, %v2788
        %2790 = vdwg.mxu0
        %v2791 = vadd.f32 %v447, %v2461
        %v2792 = vadd.f32 %v448, %v2463
        %v2793 = vadd.f32 %v449, %v2753
        %v2794 = vadd.f32 %v450, %v2755
        %v2795 = vadd.f32 %v451, %v2465
        %v2796 = vadd.f32 %v452, %v2467
        %v2797 = vadd.f32 %v453, %v2757
        %v2798 = vadd.f32 %v454, %v2759
        %v2799 = vadd.f32 %v455, %v2471
        %v2800 = vadd.f32 %v456, %v2473
        %v2801 = vadd.f32 %v457, %v2763
        %v2802 = vadd.f32 %v458, %v2765
        %v2803 = vadd.f32 %v459, %v2475
        %v2804 = vadd.f32 %v460, %v2477
        %v2805 = vadd.f32 %v461, %v2767
        %v2806 = vadd.f32 %v462, %v2769
        %v2807 = vadd.f32 %v463, %v2481
        %v2808 = vadd.f32 %v464, %v2483
        %v2809 = vadd.f32 %v465, %v2773
        %v2810 = vadd.f32 %v466, %v2775
        %v2811 = vadd.f32 %v467, %v2485
        %v2812 = vadd.f32 %v468, %v2487
        %v2813 = vadd.f32 %v469, %v2777
        %v2814 = vadd.f32 %v470, %v2779
        %v2815 = vadd.f32 %v471, %v2491
        %v2816 = vadd.f32 %v472, %v2493
        %v2817 = vadd.f32 %v473, %v2783
        %v2818 = vadd.f32 %v474, %v2785
        %v2819 = vadd.f32 %v475, %v2495
        %v2820 = vadd.f32 %v476, %v2497
        %v2821 = vadd.f32 %v477, %v2787
        %v2822 = vadd.f32 %v478, %v2789
        %2823 = vst [vmem:[%s361] sm:$0xff] %v2791
        %2824 = vst [vmem:[%s361 + $0x8] sm:$0xff] %v2792
        %2825 = vst [vmem:[%s361 + $0x10] sm:$0xff] %v2793
        %2826 = vst [vmem:[%s361 + $0x18] sm:$0xff] %v2794
        %2827 = vst [vmem:[%s361 + $0x20] sm:$0xff] %v2795
        %2828 = vst [vmem:[%s361 + $0x28] sm:$0xff] %v2796
        %2829 = vst [vmem:[%s361 + $0x30] sm:$0xff] %v2797
        %2830 = vst [vmem:[%s361 + $0x38] sm:$0xff] %v2798
        %2831 = vst [vmem:[%s361 + $0x40] sm:$0xff] %v2799
        %2832 = vst [vmem:[%s361 + $0x48] sm:$0xff] %v2800
        %2833 = vst [vmem:[%s361 + $0x50] sm:$0xff] %v2801
        %2834 = vst [vmem:[%s361 + $0x58] sm:$0xff] %v2802
        %2835 = vst [vmem:[%s361 + $0x60] sm:$0xff] %v2803
        %2836 = vst [vmem:[%s361 + $0x68] sm:$0xff] %v2804
        %2837 = vst [vmem:[%s361 + $0x70] sm:$0xff] %v2805
        %2838 = vst [vmem:[%s361 + $0x78] sm:$0xff] %v2806
        %2839 = vst [vmem:[%s361 + $0x80] sm:$0xff] %v2807
        %2840 = vst [vmem:[%s361 + $0x88] sm:$0xff] %v2808
        %2841 = vst [vmem:[%s361 + $0x90] sm:$0xff] %v2809
        %2842 = vst [vmem:[%s361 + $0x98] sm:$0xff] %v2810
        %2843 = vst [vmem:[%s361 + $0xa0] sm:$0xff] %v2811
        %2844 = vst [vmem:[%s361 + $0xa8] sm:$0xff] %v2812
        %2845 = vst [vmem:[%s361 + $0xb0] sm:$0xff] %v2813
        %2846 = vst [vmem:[%s361 + $0xb8] sm:$0xff] %v2814
        %2847 = vst [vmem:[%s361 + $0xc0] sm:$0xff] %v2815
        %2848 = vst [vmem:[%s361 + $0xc8] sm:$0xff] %v2816
        %2849 = vst [vmem:[%s361 + $0xd0] sm:$0xff] %v2817
        %2850 = vst [vmem:[%s361 + $0xd8] sm:$0xff] %v2818
        %2851 = vst [vmem:[%s361 + $0xe0] sm:$0xff] %v2819
        %2852 = vst [vmem:[%s361 + $0xe8] sm:$0xff] %v2820
        %2853 = vst [vmem:[%s361 + $0xf0] sm:$0xff] %v2821
        %2854 = vst [vmem:[%s361 + $0xf8] sm:$0xff] %v2822
        %s2855 = smul.u32 4, %s20
        %p2856 = scmp.lt.s32.totalorder %s19, 0
        %s2857 = scalar_select %p2856, %s19, 0
        %p2858 = scmp.lt.s32.totalorder %s2855, 3
        %s2859 = scalar_select %p2858, %s2855, 3
        %s2860 = smul.addr %s2857, 32
        %s2861 = sadd.s32 %s2859, %s2860
        %s2862 = smul.addr %s2861, 8
        %s2863 = scalar_lea.vmem %s3, %s2862
        // Predicated region
        $region60: #{conv2d_nchw.1} parent=50 // pred_check
          %p2864 = pneg %p137
        $region61: #{conv2d_nchw.1} parent=50 // pred_check_branch
          %2866 = sbr.rel (%p2864) target = $region63
        $region62: #{conv2d_nchw.1} parent=50 // pred_region
          %s2867 = smul.u32 4, %s20
        $region63: #{conv2d_nchw.1} parent=50 // pred_fallthru
          _
        // Predicated region
        $region64: #{conv2d_nchw.1} parent=50 // pred_check
          %p2868 = pneg %p137
        $region65: #{conv2d_nchw.1} parent=50 // pred_check_branch
          %2870 = sbr.rel (%p2868) target = $region67
        $region66: #{conv2d_nchw.1} parent=50 // pred_region
          %s2871 = smul.u32 4, %s20
          %p2872 = scmp.lt.s32.totalorder %s19, 0
          %s2873 = scalar_select %p2872, %s19, 0
          %p2874 = scmp.lt.s32.totalorder %s2871, 3
          %s2875 = scalar_select %p2874, %s2871, 3
          %s2876 = smul.addr %s2873, 32
          %s2877 = sadd.s32 %s2875, %s2876
          %s2878 = smul.addr %s2877, 8
          %s2879 = scalar_lea.vmem %s3, %s2878
        $region67: #{conv2d_nchw.1} parent=50 // pred_fallthru
          _
      $region51: #{conv2d_nchw.1} parent=5 // pred_fallthru
        _
      %p2880 = scmp.le.s32.totalorder 2, %s9
      // Predicated region
      $region68: #{conv2d_nchw.1} parent=5 // pred_check
        %p2881 = pneg %p2880
      $region69: #{conv2d_nchw.1} parent=5 // pred_check_branch
        %2883 = sbr.rel (%p2881) target = $region71
      $region70: #{conv2d_nchw.1} parent=5 // pred_region
        %s2884 = ssub.s32 %s9, 2
      $region71: #{conv2d_nchw.1} parent=5 // pred_fallthru
        _
    $region6: #{conv2d_nchw.1} parent=1 // loop_footer
      %s13 = sadd.s32 1, %s9
    $region7: #{conv2d_nchw.1} parent=1 // loop_footer_branch
      %8 = sbr.rel target = $region3
    $region8: #{conv2d_nchw.1} parent=1 // loop_exit
      _

</llo_original>
